<compile_context>
chip_gen: v6e
topology: v6e:2x2x1
jax: 0.10.0
libtpu: 0.0.40
codegen_flags: <defaults>
</compile_context>

<pallas_src>
import functools

import jax
import jax.numpy as jnp
from jax.experimental import pallas as pl
from jax.experimental.pallas import tpu as pltpu

# ----------------------------- model hyper-params ---------------------------
BASE_NEURON_COUNT = 32          # base_neuron_count in the PyTorch source
TAB_HIDDEN_SIZE = 64            # TabularFFNN hidden_layer_size
TAB_HIDDEN_COUNT = 7            # TabularFFNN hidden_layer_count
BN_EPS = 1e-5                   # nn.BatchNorm1d default eps

# Small, forward-consistent sizes for the synthetic run
BATCH = 2
IMG_C, IMG_H, IMG_W = 4, 16, 16
TABULAR_SIZE = 8
INCEPTION_N_FEATURES = 256      # stand-in for inception_v3 fc.in_features (2048)
INCEPTION_OUT = 16              # params['inception_model_output_size']
TABULAR_OUT = 16                # params['tabular_ffnn_output_size']
REG_IN = INCEPTION_OUT + TABULAR_OUT   # = 32


# ------------------------- static packed-parameter layout -------------------
def _build_layouts():
    # Every Linear except the (large) stem lives in one weight blob; every
    # bias / BN parameter lives in one bias blob.  Offsets are static Python
    # ints, so in-kernel slices of the VMEM refs are free.
    layer_dims = [("fc", INCEPTION_N_FEATURES, INCEPTION_OUT),
                  ("tab0", TABULAR_SIZE, TAB_HIDDEN_SIZE)]
    for i in range(1, TAB_HIDDEN_COUNT):
        layer_dims.append((f"tab{i}", TAB_HIDDEN_SIZE, TAB_HIDDEN_SIZE))
    layer_dims += [("tab_out", TAB_HIDDEN_SIZE, TABULAR_OUT),
                   ("reg1", REG_IN, BASE_NEURON_COUNT),
                   ("reg2", BASE_NEURON_COUNT, BASE_NEURON_COUNT),
                   ("reg3", BASE_NEURON_COUNT, BASE_NEURON_COUNT // 2),
                   ("reg4", BASE_NEURON_COUNT // 2, 1)]

    w_layout, off = {}, 0
    for name, din, dout in layer_dims:
        w_layout[name] = (off, din, dout)
        off += din
    w_rows = off                                   # 824 (multiple of 8)
    w_cols = max(d for _, _, d in layer_dims)      # 64

    b_order = (["stem", "fc"] + [f"tab{i}" for i in range(TAB_HIDDEN_COUNT)]
               + ["tab_out", "reg1", "bn_gamma", "bn_beta",
                  "reg2", "reg3", "reg4"])
    b_width = {"stem": INCEPTION_N_FEATURES, "fc": INCEPTION_OUT,
               "tab_out": TABULAR_OUT, "reg1": BASE_NEURON_COUNT,
               "bn_gamma": BASE_NEURON_COUNT, "bn_beta": BASE_NEURON_COUNT,
               "reg2": BASE_NEURON_COUNT, "reg3": BASE_NEURON_COUNT // 2,
               "reg4": 1}
    for i in range(TAB_HIDDEN_COUNT):
        b_width[f"tab{i}"] = TAB_HIDDEN_SIZE
    b_layout = {n: (i, b_width[n]) for i, n in enumerate(b_order)}
    b_cols = -(-max(b_width.values()) // 128) * 128   # lane-aligned (256)
    return layer_dims, w_layout, w_rows, w_cols, b_order, b_layout, len(b_order), b_cols


(_LAYER_DIMS, _W_LAYOUT, W_BLOB_ROWS, W_BLOB_COLS,
 _B_ORDER, _B_LAYOUT, B_BLOB_ROWS, B_BLOB_COLS) = _build_layouts()


# --------------------------------- kernel -----------------------------------
def _price_kernel(img_ref, tab_ref, stem_w_ref, wblob_ref, bblob_ref, out_ref,
                  *, valid_b):
    """One fused invocation: all matmuls / ReLUs / BatchNorm stay in VMEM."""

    def weight(name):
        r0, din, dout = _W_LAYOUT[name]
        return wblob_ref[r0:r0 + din, 0:dout]          # static slice: free

    def bias(name):
        r, n = _B_LAYOUT[name]
        return bblob_ref[r:r + 1, 0:n]

    def dot(x, w):
        return jnp.dot(x, w, preferred_element_type=jnp.float32)

    img = img_ref[...]                                  # (PB, C*H*W) f32
    tab = tab_ref[...]                                  # (PB, T)     f32

    # ---------------- ModifiedInception branch ----------------
    # TODO(synk): the frozen pretrained timm inception_v3 backbone cannot be
    # reproduced in-script; a deterministic linear stem with matching
    # input/output shapes stands in for it, followed by the trainable fc.
    # The stem weight (dominant HBM traffic) is stored bf16; accumulate f32.
    feat = jnp.maximum(
        dot(img.astype(jnp.bfloat16), stem_w_ref[...]) + bias("stem"), 0.0)
    image_out = dot(feat, weight("fc")) + bias("fc")    # (PB, INCEPTION_OUT)

    # ---------------- TabularFFNN branch ----------------
    h = tab
    for i in range(TAB_HIDDEN_COUNT):                   # 7 x (Linear + ReLU)
        h = jnp.maximum(dot(h, weight(f"tab{i}")) + bias(f"tab{i}"), 0.0)
    tab_out = dot(h, weight("tab_out")) + bias("tab_out")   # (PB, TABULAR_OUT)

    # ---------------- RegressionModel ----------------
    # Concat-free first layer: split reg1's weight rows and sum two dots,
    # avoiding the cross-lane shuffle of jnp.concatenate on sub-128 data.
    r0, din, dout = _W_LAYOUT["reg1"]
    w_img = wblob_ref[r0:r0 + INCEPTION_OUT, 0:dout]
    w_tab = wblob_ref[r0 + INCEPTION_OUT:r0 + din, 0:dout]
    h = dot(image_out, w_img) + dot(tab_out, w_tab) + bias("reg1")   # (PB, 32)

    # BatchNorm1d with training-mode batch statistics (module default),
    # masked so padded batch rows do not contaminate the stats.
    # Single-pass stats: sum and sum-of-squares are independent reductions.
    # TODO(synk): eval-mode running_mean/running_var are not modeled.
    pb = h.shape[0]
    mask = (jax.lax.broadcasted_iota(jnp.int32, (pb, 1), 0)
            < valid_b).astype(jnp.float32)
    inv_b = 1.0 / valid_b
    hm = h * mask
    s1 = jnp.sum(hm, axis=0, keepdims=True)
    s2 = jnp.sum(hm * h, axis=0, keepdims=True)
    mean = s1 * inv_b
    var = s2 * inv_b - mean * mean                      # biased variance
    h = (h - mean) * jax.lax.rsqrt(var + BN_EPS) * bias("bn_gamma") + bias("bn_beta")
    h = jnp.maximum(h, 0.0)

    h = jnp.maximum(dot(h, weight("reg2")) + bias("reg2"), 0.0)   # Linear+ReLU
    h = jnp.maximum(dot(h, weight("reg3")) + bias("reg3"), 0.0)   # Linear+ReLU
    out_ref[...] = dot(h, weight("reg4")) + bias("reg4")          # (PB, 1)


# ----------------------------- parameter handling ----------------------------
def _init_params(key):
    """Deterministic parameters (shapes follow the PyTorch module). Flat list:
    stem(w,b), fc(w,b), tab0..tab6(w,b), tab_out(w,b), reg1(w,b),
    bn_gamma, bn_beta, reg2(w,b), reg3(w,b), reg4(w,b)."""
    def lin(key, fan_in, fan_out):
        kw, kb = jax.random.split(key)
        scale = 1.0 / jnp.sqrt(jnp.float32(fan_in))
        w = jax.random.uniform(kw, (fan_in, fan_out), jnp.float32, -scale, scale)
        b = jax.random.uniform(kb, (1, fan_out), jnp.float32, -scale, scale)
        return w, b

    params = []
    keys = iter(jax.random.split(key, 32))

    params += list(lin(next(keys), IMG_C * IMG_H * IMG_W, INCEPTION_N_FEATURES))
    params += list(lin(next(keys), INCEPTION_N_FEATURES, INCEPTION_OUT))

    params += list(lin(next(keys), TABULAR_SIZE, TAB_HIDDEN_SIZE))
    for _ in range(TAB_HIDDEN_COUNT - 1):
        params += list(lin(next(keys), TAB_HIDDEN_SIZE, TAB_HIDDEN_SIZE))
    params += list(lin(next(keys), TAB_HIDDEN_SIZE, TABULAR_OUT))

    params += list(lin(next(keys), REG_IN, BASE_NEURON_COUNT))
    params += [jnp.ones((1, BASE_NEURON_COUNT), jnp.float32),    # BN gamma
               jnp.zeros((1, BASE_NEURON_COUNT), jnp.float32)]   # BN beta
    params += list(lin(next(keys), BASE_NEURON_COUNT, BASE_NEURON_COUNT))
    params += list(lin(next(keys), BASE_NEURON_COUNT, BASE_NEURON_COUNT // 2))
    params += list(lin(next(keys), BASE_NEURON_COUNT // 2, 1))
    return params


def pack_params(params):
    """Pack flat params into 3 blobs (run ONCE; blobs stay resident on device):
       stem weight (bf16), weight blob (f32), bias/BN blob (f32)."""
    it = iter(params)
    stem_w, stem_b = next(it), next(it)
    named_w, named_b = {}, {"stem": stem_b}

    def take(name):
        named_w[name], named_b[name] = next(it), next(it)

    take("fc")
    for i in range(TAB_HIDDEN_COUNT):
        take(f"tab{i}")
    take("tab_out")
    take("reg1")
    named_b["bn_gamma"], named_b["bn_beta"] = next(it), next(it)
    take("reg2")
    take("reg3")
    take("reg4")

    w_rows = []
    for name, din, dout in _LAYER_DIMS:
        w = named_w[name].astype(jnp.float32)
        assert w.shape == (din, dout)
        w_rows.append(jnp.pad(w, ((0, 0), (0, W_BLOB_COLS - dout))))
    wblob = jnp.concatenate(w_rows, axis=0)            # (W_BLOB_ROWS, 64)

    b_rows = []
    for name in _B_ORDER:
        bvec = named_b[name].reshape(1, -1).astype(jnp.float32)
        b_rows.append(jnp.pad(bvec, ((0, 0), (0, B_BLOB_COLS - bvec.shape[1]))))
    bblob = jnp.concatenate(b_rows, axis=0)            # (16, 256)

    return stem_w.astype(jnp.bfloat16), wblob, bblob


# --------------------------------- wrapper ----------------------------------
@jax.jit
def price_prediction_forward(image_tensor, tabular_data, stem_w, wblob, bblob):
    """image_tensor: (B, C, H, W) NCHW; tabular_data: (B, T). Returns (B, 1)."""
    b = image_tensor.shape[0]
    pad_b = max(8, ((b + 7) // 8) * 8)                 # f32 sublane alignment
    img = image_tensor.reshape(b, -1).astype(jnp.float32)
    tab = tabular_data.reshape(b, -1).astype(jnp.float32)   # x.view(x.size(0), -1)
    if pad_b != b:
        img = jnp.pad(img, ((0, pad_b - b), (0, 0)))
        tab = jnp.pad(tab, ((0, pad_b - b), (0, 0)))

    vmem = pl.BlockSpec(memory_space=pltpu.MemorySpace.VMEM)
    # NOTE: grid-less single invocation — whole problem (<1 MiB) fits VMEM on
    # v5e/v6e/v7x. If batch / feature dims grow to production scale, tile the
    # stem matmul with a BlockSpec grid and make the batch axis "parallel".
    out = pl.pallas_call(
        functools.partial(_price_kernel, valid_b=b),
        out_shape=jax.ShapeDtypeStruct((pad_b, 1), jnp.float32),
        in_specs=[vmem] * 5,
        out_specs=vmem,
    )(img, tab, stem_w, wblob, bblob)
    return out[:b]


# ------------------------- pure-JAX reference (check) ------------------------
def _reference(image_tensor, tabular_data, params):
    it = iter(params)
    img = image_tensor.reshape(image_tensor.shape[0], -1).astype(jnp.float32)
    tab = tabular_data.reshape(tabular_data.shape[0], -1).astype(jnp.float32)
    bw, bb = next(it), next(it)
    # Mirror the kernel's bf16 stem-weight storage (f32 accumulation).
    feat = jnp.maximum(
        jnp.dot(img.astype(jnp.bfloat16), bw.astype(jnp.bfloat16),
                preferred_element_type=jnp.float32) + bb, 0.0)
    fw, fb = next(it), next(it)
    image_out = feat @ fw + fb
    h = tab
    for _ in range(TAB_HIDDEN_COUNT):
        w, b = next(it), next(it)
        h = jnp.maximum(h @ w + b, 0.0)
    w, b = next(it), next(it)
    tab_out = h @ w + b
    h = jnp.concatenate([image_out, tab_out], axis=1)
    w, b = next(it), next(it)
    h = h @ w + b
    gamma, beta = next(it), next(it)
    mean = jnp.mean(h, axis=0, keepdims=True)
    var = jnp.mean((h - mean) ** 2, axis=0, keepdims=True)
    h = jnp.maximum((h - mean) / jnp.sqrt(var + BN_EPS) * gamma + beta, 0.0)
    w, b = next(it), next(it)
    h = jnp.maximum(h @ w + b, 0.0)
    w, b = next(it), next(it)
    h = jnp.maximum(h @ w + b, 0.0)
    w, b = next(it), next(it)
    return h @ w + b


# ----------------------------------- main ------------------------------------
if __name__ == "__main__":
    key = jax.random.PRNGKey(0)
    k_img, k_tab, k_par = jax.random.split(key, 3)

    image_tensor = jax.random.normal(k_img, (BATCH, IMG_C, IMG_H, IMG_W), jnp.float32)
    tabular_data = jax.random.normal(k_tab, (BATCH, TABULAR_SIZE), jnp.float32)
    params = _init_params(k_par)

    # Pack parameters ONCE (blobs stay resident across repeated forward calls).
    stem_w_bf16, wblob, bblob = pack_params(params)

    price = price_prediction_forward(image_tensor, tabular_data,
                                     stem_w_bf16, wblob, bblob)
    price = jax.block_until_ready(price)

    ref = _reference(image_tensor, tabular_data, params)
    assert price.shape == (BATCH, 1)
    assert jnp.allclose(price, ref, atol=2e-3, rtol=2e-3), (price, ref)

    print("KERNEL_OK")
</pallas_src>

<mosaic_0001>
module attributes {stable_mosaic.version = 11 : i64} {
  func.func @_price_kernel(%arg0: memref<8x1024xf32, #tpu.memory_space<vmem>>, %arg1: memref<8x8xf32, #tpu.memory_space<vmem>>, %arg2: memref<1024x256xbf16, #tpu.memory_space<vmem>>, %arg3: memref<824x64xf32, #tpu.memory_space<vmem>>, %arg4: memref<16x256xf32, #tpu.memory_space<vmem>>, %arg5: memref<8x1xf32, #tpu.memory_space<vmem>>) attributes {dimension_semantics = [], scalar_prefetch = 0 : i64, scratch_operands = 0 : i64, tpu.core_type = #tpu.core_type<tc>} {
    %c0 = arith.constant 0 : index
    %c0_0 = arith.constant 0 : index
    %0 = vector.load %arg0[%c0, %c0_0] : memref<8x1024xf32, #tpu.memory_space<vmem>>, vector<8x1024xf32>
    %c0_1 = arith.constant 0 : index
    %c0_2 = arith.constant 0 : index
    %1 = vector.load %arg1[%c0_1, %c0_2] : memref<8x8xf32, #tpu.memory_space<vmem>>, vector<8x8xf32>
    %2 = arith.truncf %0 : vector<8x1024xf32> to vector<8x1024xbf16>
    %c0_3 = arith.constant 0 : index
    %c0_4 = arith.constant 0 : index
    %3 = vector.load %arg2[%c0_3, %c0_4] : memref<1024x256xbf16, #tpu.memory_space<vmem>>, vector<1024x256xbf16>
    %cst = arith.constant dense<0.000000e+00> : vector<8x256xf32>
    %4 = tpu.matmul %2, %3, %cst {dimension_numbers = #tpu.dot_dimension_numbers<[1], [0], [0], [1], [0, 0, 1, 1], [], []>} : vector<8x1024xbf16>, vector<1024x256xbf16>, vector<8x256xf32> -> vector<8x256xf32>
    %c0_5 = arith.constant 0 : index
    %c0_6 = arith.constant 0 : index
    %5 = vector.load %arg4[%c0_5, %c0_6] : memref<16x256xf32, #tpu.memory_space<vmem>>, vector<1x256xf32>
    %6 = vector.broadcast %5 : vector<1x256xf32> to vector<8x256xf32>
    %7 = arith.addf %4, %6 : vector<8x256xf32>
    %cst_7 = arith.constant 0.000000e+00 : f32
    %8 = vector.broadcast %cst_7 : f32 to vector<8x256xf32>
    %9 = arith.maximumf %7, %8 : vector<8x256xf32>
    %c0_8 = arith.constant 0 : index
    %c0_9 = arith.constant 0 : index
    %10 = vector.load %arg3[%c0_8, %c0_9] : memref<824x64xf32, #tpu.memory_space<vmem>>, vector<256x16xf32>
    %cst_10 = arith.constant dense<0.000000e+00> : vector<8x16xf32>
    %11 = tpu.matmul %9, %10, %cst_10 {dimension_numbers = #tpu.dot_dimension_numbers<[1], [0], [0], [1], [0, 0, 1, 1], [], []>} : vector<8x256xf32>, vector<256x16xf32>, vector<8x16xf32> -> vector<8x16xf32>
    %c1 = arith.constant 1 : index
    %c0_11 = arith.constant 0 : index
    %12 = vector.load %arg4[%c1, %c0_11] : memref<16x256xf32, #tpu.memory_space<vmem>>, vector<1x16xf32>
    %13 = vector.broadcast %12 : vector<1x16xf32> to vector<8x16xf32>
    %14 = arith.addf %11, %13 : vector<8x16xf32>
    %c256 = arith.constant 256 : index
    %c0_12 = arith.constant 0 : index
    %15 = vector.load %arg3[%c256, %c0_12] : memref<824x64xf32, #tpu.memory_space<vmem>>, vector<8x64xf32>
    %cst_13 = arith.constant dense<0.000000e+00> : vector<8x64xf32>
    %16 = tpu.matmul %1, %15, %cst_13 {dimension_numbers = #tpu.dot_dimension_numbers<[1], [0], [0], [1], [0, 0, 1, 1], [], []>} : vector<8x8xf32>, vector<8x64xf32>, vector<8x64xf32> -> vector<8x64xf32>
    %c2 = arith.constant 2 : index
    %c0_14 = arith.constant 0 : index
    %17 = vector.load %arg4[%c2, %c0_14] : memref<16x256xf32, #tpu.memory_space<vmem>>, vector<1x64xf32>
    %18 = vector.broadcast %17 : vector<1x64xf32> to vector<8x64xf32>
    %19 = arith.addf %16, %18 : vector<8x64xf32>
    %cst_15 = arith.constant 0.000000e+00 : f32
    %20 = vector.broadcast %cst_15 : f32 to vector<8x64xf32>
    %21 = arith.maximumf %19, %20 : vector<8x64xf32>
    %c264 = arith.constant 264 : index
    %c0_16 = arith.constant 0 : index
    %22 = vector.load %arg3[%c264, %c0_16] : memref<824x64xf32, #tpu.memory_space<vmem>>, vector<64x64xf32>
    %cst_17 = arith.constant dense<0.000000e+00> : vector<8x64xf32>
    %23 = tpu.matmul %21, %22, %cst_17 {dimension_numbers = #tpu.dot_dimension_numbers<[1], [0], [0], [1], [0, 0, 1, 1], [], []>} : vector<8x64xf32>, vector<64x64xf32>, vector<8x64xf32> -> vector<8x64xf32>
    %c3 = arith.constant 3 : index
    %c0_18 = arith.constant 0 : index
    %24 = vector.load %arg4[%c3, %c0_18] : memref<16x256xf32, #tpu.memory_space<vmem>>, vector<1x64xf32>
    %25 = vector.broadcast %24 : vector<1x64xf32> to vector<8x64xf32>
    %26 = arith.addf %23, %25 : vector<8x64xf32>
    %cst_19 = arith.constant 0.000000e+00 : f32
    %27 = vector.broadcast %cst_19 : f32 to vector<8x64xf32>
    %28 = arith.maximumf %26, %27 : vector<8x64xf32>
    %c328 = arith.constant 328 : index
    %c0_20 = arith.constant 0 : index
    %29 = vector.load %arg3[%c328, %c0_20] : memref<824x64xf32, #tpu.memory_space<vmem>>, vector<64x64xf32>
    %cst_21 = arith.constant dense<0.000000e+00> : vector<8x64xf32>
    %30 = tpu.matmul %28, %29, %cst_21 {dimension_numbers = #tpu.dot_dimension_numbers<[1], [0], [0], [1], [0, 0, 1, 1], [], []>} : vector<8x64xf32>, vector<64x64xf32>, vector<8x64xf32> -> vector<8x64xf32>
    %c4 = arith.constant 4 : index
    %c0_22 = arith.constant 0 : index
    %31 = vector.load %arg4[%c4, %c0_22] : memref<16x256xf32, #tpu.memory_space<vmem>>, vector<1x64xf32>
    %32 = vector.broadcast %31 : vector<1x64xf32> to vector<8x64xf32>
    %33 = arith.addf %30, %32 : vector<8x64xf32>
    %cst_23 = arith.constant 0.000000e+00 : f32
    %34 = vector.broadcast %cst_23 : f32 to vector<8x64xf32>
    %35 = arith.maximumf %33, %34 : vector<8x64xf32>
    %c392 = arith.constant 392 : index
    %c0_24 = arith.constant 0 : index
    %36 = vector.load %arg3[%c392, %c0_24] : memref<824x64xf32, #tpu.memory_space<vmem>>, vector<64x64xf32>
    %cst_25 = arith.constant dense<0.000000e+00> : vector<8x64xf32>
    %37 = tpu.matmul %35, %36, %cst_25 {dimension_numbers = #tpu.dot_dimension_numbers<[1], [0], [0], [1], [0, 0, 1, 1], [], []>} : vector<8x64xf32>, vector<64x64xf32>, vector<8x64xf32> -> vector<8x64xf32>
    %c5 = arith.constant 5 : index
    %c0_26 = arith.constant 0 : index
    %38 = vector.load %arg4[%c5, %c0_26] : memref<16x256xf32, #tpu.memory_space<vmem>>, vector<1x64xf32>
    %39 = vector.broadcast %38 : vector<1x64xf32> to vector<8x64xf32>
    %40 = arith.addf %37, %39 : vector<8x64xf32>
    %cst_27 = arith.constant 0.000000e+00 : f32
    %41 = vector.broadcast %cst_27 : f32 to vector<8x64xf32>
    %42 = arith.maximumf %40, %41 : vector<8x64xf32>
    %c456 = arith.constant 456 : index
    %c0_28 = arith.constant 0 : index
    %43 = vector.load %arg3[%c456, %c0_28] : memref<824x64xf32, #tpu.memory_space<vmem>>, vector<64x64xf32>
    %cst_29 = arith.constant dense<0.000000e+00> : vector<8x64xf32>
    %44 = tpu.matmul %42, %43, %cst_29 {dimension_numbers = #tpu.dot_dimension_numbers<[1], [0], [0], [1], [0, 0, 1, 1], [], []>} : vector<8x64xf32>, vector<64x64xf32>, vector<8x64xf32> -> vector<8x64xf32>
    %c6 = arith.constant 6 : index
    %c0_30 = arith.constant 0 : index
    %45 = vector.load %arg4[%c6, %c0_30] : memref<16x256xf32, #tpu.memory_space<vmem>>, vector<1x64xf32>
    %46 = vector.broadcast %45 : vector<1x64xf32> to vector<8x64xf32>
    %47 = arith.addf %44, %46 : vector<8x64xf32>
    %cst_31 = arith.constant 0.000000e+00 : f32
    %48 = vector.broadcast %cst_31 : f32 to vector<8x64xf32>
    %49 = arith.maximumf %47, %48 : vector<8x64xf32>
    %c520 = arith.constant 520 : index
    %c0_32 = arith.constant 0 : index
    %50 = vector.load %arg3[%c520, %c0_32] : memref<824x64xf32, #tpu.memory_space<vmem>>, vector<64x64xf32>
    %cst_33 = arith.constant dense<0.000000e+00> : vector<8x64xf32>
    %51 = tpu.matmul %49, %50, %cst_33 {dimension_numbers = #tpu.dot_dimension_numbers<[1], [0], [0], [1], [0, 0, 1, 1], [], []>} : vector<8x64xf32>, vector<64x64xf32>, vector<8x64xf32> -> vector<8x64xf32>
    %c7 = arith.constant 7 : index
    %c0_34 = arith.constant 0 : index
    %52 = vector.load %arg4[%c7, %c0_34] : memref<16x256xf32, #tpu.memory_space<vmem>>, vector<1x64xf32>
    %53 = vector.broadcast %52 : vector<1x64xf32> to vector<8x64xf32>
    %54 = arith.addf %51, %53 : vector<8x64xf32>
    %cst_35 = arith.constant 0.000000e+00 : f32
    %55 = vector.broadcast %cst_35 : f32 to vector<8x64xf32>
    %56 = arith.maximumf %54, %55 : vector<8x64xf32>
    %c584 = arith.constant 584 : index
    %c0_36 = arith.constant 0 : index
    %57 = vector.load %arg3[%c584, %c0_36] : memref<824x64xf32, #tpu.memory_space<vmem>>, vector<64x64xf32>
    %cst_37 = arith.constant dense<0.000000e+00> : vector<8x64xf32>
    %58 = tpu.matmul %56, %57, %cst_37 {dimension_numbers = #tpu.dot_dimension_numbers<[1], [0], [0], [1], [0, 0, 1, 1], [], []>} : vector<8x64xf32>, vector<64x64xf32>, vector<8x64xf32> -> vector<8x64xf32>
    %c8 = arith.constant 8 : index
    %c0_38 = arith.constant 0 : index
    %59 = vector.load %arg4[%c8, %c0_38] : memref<16x256xf32, #tpu.memory_space<vmem>>, vector<1x64xf32>
    %60 = vector.broadcast %59 : vector<1x64xf32> to vector<8x64xf32>
    %61 = arith.addf %58, %60 : vector<8x64xf32>
    %cst_39 = arith.constant 0.000000e+00 : f32
    %62 = vector.broadcast %cst_39 : f32 to vector<8x64xf32>
    %63 = arith.maximumf %61, %62 : vector<8x64xf32>
    %c648 = arith.constant 648 : index
    %c0_40 = arith.constant 0 : index
    %64 = vector.load %arg3[%c648, %c0_40] : memref<824x64xf32, #tpu.memory_space<vmem>>, vector<64x16xf32>
    %cst_41 = arith.constant dense<0.000000e+00> : vector<8x16xf32>
    %65 = tpu.matmul %63, %64, %cst_41 {dimension_numbers = #tpu.dot_dimension_numbers<[1], [0], [0], [1], [0, 0, 1, 1], [], []>} : vector<8x64xf32>, vector<64x16xf32>, vector<8x16xf32> -> vector<8x16xf32>
    %c9 = arith.constant 9 : index
    %c0_42 = arith.constant 0 : index
    %66 = vector.load %arg4[%c9, %c0_42] : memref<16x256xf32, #tpu.memory_space<vmem>>, vector<1x16xf32>
    %67 = vector.broadcast %66 : vector<1x16xf32> to vector<8x16xf32>
    %68 = arith.addf %65, %67 : vector<8x16xf32>
    %c712 = arith.constant 712 : index
    %c0_43 = arith.constant 0 : index
    %69 = vector.load %arg3[%c712, %c0_43] : memref<824x64xf32, #tpu.memory_space<vmem>>, vector<16x32xf32>
    %c728 = arith.constant 728 : index
    %c0_44 = arith.constant 0 : index
    %70 = vector.load %arg3[%c728, %c0_44] : memref<824x64xf32, #tpu.memory_space<vmem>>, vector<16x32xf32>
    %cst_45 = arith.constant dense<0.000000e+00> : vector<8x32xf32>
    %71 = tpu.matmul %14, %69, %cst_45 {dimension_numbers = #tpu.dot_dimension_numbers<[1], [0], [0], [1], [0, 0, 1, 1], [], []>} : vector<8x16xf32>, vector<16x32xf32>, vector<8x32xf32> -> vector<8x32xf32>
    %cst_46 = arith.constant dense<0.000000e+00> : vector<8x32xf32>
    %72 = tpu.matmul %68, %70, %cst_46 {dimension_numbers = #tpu.dot_dimension_numbers<[1], [0], [0], [1], [0, 0, 1, 1], [], []>} : vector<8x16xf32>, vector<16x32xf32>, vector<8x32xf32> -> vector<8x32xf32>
    %73 = arith.addf %71, %72 : vector<8x32xf32>
    %c10 = arith.constant 10 : index
    %c0_47 = arith.constant 0 : index
    %74 = vector.load %arg4[%c10, %c0_47] : memref<16x256xf32, #tpu.memory_space<vmem>>, vector<1x32xf32>
    %75 = vector.broadcast %74 : vector<1x32xf32> to vector<8x32xf32>
    %76 = arith.addf %73, %75 : vector<8x32xf32>
    %77 = tpu.iota {dimensions = array<i32: 0>} : vector<8x1xi32>
    %c2_i32 = arith.constant 2 : i32
    %78 = vector.broadcast %c2_i32 : i32 to vector<8x1xi32>
    %79 = arith.cmpi slt, %77, %78 : vector<8x1xi32>
    %80 = arith.extui %79 : vector<8x1xi1> to vector<8x1xi32>
    %81 = arith.sitofp %80 : vector<8x1xi32> to vector<8x1xf32>
    %82 = vector.broadcast %81 : vector<8x1xf32> to vector<8x32xf32>
    %83 = arith.mulf %76, %82 : vector<8x32xf32>
    %cst_48 = arith.constant dense<0.000000e+00> : vector<32xf32>
    %84 = vector.multi_reduction <add>, %83, %cst_48 [0] : vector<8x32xf32> to vector<32xf32>
    %85 = vector.shape_cast %84 : vector<32xf32> to vector<1x32xf32>
    %86 = arith.mulf %83, %76 : vector<8x32xf32>
    %cst_49 = arith.constant dense<0.000000e+00> : vector<32xf32>
    %87 = vector.multi_reduction <add>, %86, %cst_49 [0] : vector<8x32xf32> to vector<32xf32>
    %88 = vector.shape_cast %87 : vector<32xf32> to vector<1x32xf32>
    %cst_50 = arith.constant 5.000000e-01 : f32
    %89 = vector.broadcast %cst_50 : f32 to vector<1x32xf32>
    %90 = arith.mulf %85, %89 : vector<1x32xf32>
    %cst_51 = arith.constant 5.000000e-01 : f32
    %91 = vector.broadcast %cst_51 : f32 to vector<1x32xf32>
    %92 = arith.mulf %88, %91 : vector<1x32xf32>
    %93 = arith.mulf %90, %90 : vector<1x32xf32>
    %94 = arith.subf %92, %93 : vector<1x32xf32>
    %95 = vector.broadcast %90 : vector<1x32xf32> to vector<8x32xf32>
    %96 = arith.subf %76, %95 : vector<8x32xf32>
    %cst_52 = arith.constant 9.99999974E-6 : f32
    %97 = vector.broadcast %cst_52 : f32 to vector<1x32xf32>
    %98 = arith.addf %94, %97 : vector<1x32xf32>
    %99 = math.rsqrt %98 : vector<1x32xf32>
    %100 = vector.broadcast %99 : vector<1x32xf32> to vector<8x32xf32>
    %101 = arith.mulf %96, %100 : vector<8x32xf32>
    %c11 = arith.constant 11 : index
    %c0_53 = arith.constant 0 : index
    %102 = vector.load %arg4[%c11, %c0_53] : memref<16x256xf32, #tpu.memory_space<vmem>>, vector<1x32xf32>
    %103 = vector.broadcast %102 : vector<1x32xf32> to vector<8x32xf32>
    %104 = arith.mulf %101, %103 : vector<8x32xf32>
    %c12 = arith.constant 12 : index
    %c0_54 = arith.constant 0 : index
    %105 = vector.load %arg4[%c12, %c0_54] : memref<16x256xf32, #tpu.memory_space<vmem>>, vector<1x32xf32>
    %106 = vector.broadcast %105 : vector<1x32xf32> to vector<8x32xf32>
    %107 = arith.addf %104, %106 : vector<8x32xf32>
    %cst_55 = arith.constant 0.000000e+00 : f32
    %108 = vector.broadcast %cst_55 : f32 to vector<8x32xf32>
    %109 = arith.maximumf %107, %108 : vector<8x32xf32>
    %c744 = arith.constant 744 : index
    %c0_56 = arith.constant 0 : index
    %110 = vector.load %arg3[%c744, %c0_56] : memref<824x64xf32, #tpu.memory_space<vmem>>, vector<32x32xf32>
    %cst_57 = arith.constant dense<0.000000e+00> : vector<8x32xf32>
    %111 = tpu.matmul %109, %110, %cst_57 {dimension_numbers = #tpu.dot_dimension_numbers<[1], [0], [0], [1], [0, 0, 1, 1], [], []>} : vector<8x32xf32>, vector<32x32xf32>, vector<8x32xf32> -> vector<8x32xf32>
    %c13 = arith.constant 13 : index
    %c0_58 = arith.constant 0 : index
    %112 = vector.load %arg4[%c13, %c0_58] : memref<16x256xf32, #tpu.memory_space<vmem>>, vector<1x32xf32>
    %113 = vector.broadcast %112 : vector<1x32xf32> to vector<8x32xf32>
    %114 = arith.addf %111, %113 : vector<8x32xf32>
    %cst_59 = arith.constant 0.000000e+00 : f32
    %115 = vector.broadcast %cst_59 : f32 to vector<8x32xf32>
    %116 = arith.maximumf %114, %115 : vector<8x32xf32>
    %c776 = arith.constant 776 : index
    %c0_60 = arith.constant 0 : index
    %117 = vector.load %arg3[%c776, %c0_60] : memref<824x64xf32, #tpu.memory_space<vmem>>, vector<32x16xf32>
    %cst_61 = arith.constant dense<0.000000e+00> : vector<8x16xf32>
    %118 = tpu.matmul %116, %117, %cst_61 {dimension_numbers = #tpu.dot_dimension_numbers<[1], [0], [0], [1], [0, 0, 1, 1], [], []>} : vector<8x32xf32>, vector<32x16xf32>, vector<8x16xf32> -> vector<8x16xf32>
    %c14 = arith.constant 14 : index
    %c0_62 = arith.constant 0 : index
    %119 = vector.load %arg4[%c14, %c0_62] : memref<16x256xf32, #tpu.memory_space<vmem>>, vector<1x16xf32>
    %120 = vector.broadcast %119 : vector<1x16xf32> to vector<8x16xf32>
    %121 = arith.addf %118, %120 : vector<8x16xf32>
    %cst_63 = arith.constant 0.000000e+00 : f32
    %122 = vector.broadcast %cst_63 : f32 to vector<8x16xf32>
    %123 = arith.maximumf %121, %122 : vector<8x16xf32>
    %c808 = arith.constant 808 : index
    %c0_64 = arith.constant 0 : index
    %124 = vector.load %arg3[%c808, %c0_64] : memref<824x64xf32, #tpu.memory_space<vmem>>, vector<16x1xf32>
    %cst_65 = arith.constant dense<0.000000e+00> : vector<8x1xf32>
    %125 = tpu.matmul %123, %124, %cst_65 {dimension_numbers = #tpu.dot_dimension_numbers<[1], [0], [0], [1], [0, 0, 1, 1], [], []>} : vector<8x16xf32>, vector<16x1xf32>, vector<8x1xf32> -> vector<8x1xf32>
    %c15 = arith.constant 15 : index
    %c0_66 = arith.constant 0 : index
    %126 = vector.load %arg4[%c15, %c0_66] : memref<16x256xf32, #tpu.memory_space<vmem>>, vector<1x1xf32>
    %127 = vector.broadcast %126 : vector<1x1xf32> to vector<8x1xf32>
    %128 = arith.addf %125, %127 : vector<8x1xf32>
    %c0_67 = arith.constant 0 : index
    %c0_68 = arith.constant 0 : index
    %129 = vector.load %arg5[%c0_67, %c0_68] : memref<8x1xf32, #tpu.memory_space<vmem>>, vector<8x1xf32>
    tpu.vector_store %arg5[%c0_67, %c0_68], %128 {strides = array<i32>} : memref<8x1xf32, #tpu.memory_space<vmem>>, vector<8x1xf32>,
    return
  }
}

</mosaic_0001>

<llo_original>
// kernel: price_prediction_forward.1
$region0: #{price_prediction_forward.1}
  #allocation0 [shape = 'u32[]', space=smem, size = 0x4, offset = 0x4, fixed_abs, tag = 'smem constant byte address 0x4 - core index']
  #allocation1 [shape = 'u32[144,128]{1,0:T(1,128)}', space=vmem, size = 0x12000, scoped, tag = 'internal scratch']
  %s0 = inlined_call_operand.vmem [shape: f32[8,1024], index: 0, kind: input, shape index: {}]
  %s1 = inlined_call_operand.vmem [shape: f32[8,8], index: 1, kind: input, shape index: {}]
  %s2 = inlined_call_operand.vmem [shape: bf16[1024,256], index: 2, kind: input, shape index: {}]
  %s3 = inlined_call_operand.vmem [shape: f32[824,64], index: 3, kind: input, shape index: {}]
  %s4 = inlined_call_operand.vmem [shape: f32[16,256], index: 4, kind: input, shape index: {}]
  %s5 = inlined_call_operand.vmem [shape: f32[8,1], index: 5, kind: output, shape index: {}]
  %s6 = sld [smem:[#allocation0]]
  $region30: #{price_prediction_forward.1} parent=0
    _
  %s8 = ssub.s32 1, %s6
  %s9 = scalar_select 0, %s8, %s6
  // Predicated region
  $region2: #{price_prediction_forward.1} parent=0 // pred_check
    _
  $region3: #{price_prediction_forward.1} parent=0 // pred_check_branch
    %11 = sbr.rel (0) target = $region5
  $region4: #{price_prediction_forward.1} parent=0 // pred_region
    _
  $region5: #{price_prediction_forward.1} parent=0 // pred_fallthru
    _
  // Predicated region
  $region6: #{price_prediction_forward.1} parent=0 // pred_check
    _
  $region7: #{price_prediction_forward.1} parent=0 // pred_check_branch
    %13 = sbr.rel (0) target = $region9
  $region8: #{price_prediction_forward.1} parent=0 // pred_region
    _
  $region9: #{price_prediction_forward.1} parent=0 // pred_fallthru
    _
  // Predicated region
  $region10: #{price_prediction_forward.1} parent=0 // pred_check
    _
  $region11: #{price_prediction_forward.1} parent=0 // pred_check_branch
    %15 = sbr.rel (0) target = $region13
  $region12: #{price_prediction_forward.1} parent=0 // pred_region
    _
  $region13: #{price_prediction_forward.1} parent=0 // pred_fallthru
    _
  // Predicated region
  $region14: #{price_prediction_forward.1} parent=0 // pred_check
    _
  $region15: #{price_prediction_forward.1} parent=0 // pred_check_branch
    %17 = sbr.rel (0) target = $region17
  $region16: #{price_prediction_forward.1} parent=0 // pred_region
    _
  $region17: #{price_prediction_forward.1} parent=0 // pred_fallthru
    _
  // Predicated region
  $region18: #{price_prediction_forward.1} parent=0 // pred_check
    _
  $region19: #{price_prediction_forward.1} parent=0 // pred_check_branch
    %19 = sbr.rel (0) target = $region21
  $region20: #{price_prediction_forward.1} parent=0 // pred_region
    _
  $region21: #{price_prediction_forward.1} parent=0 // pred_fallthru
    _
  %v20 = vld [vmem:[%s0] sm:$0xff]
  %v21 = vld [vmem:[%s0 + $0x8] sm:$0xff]
  %v22 = vld [vmem:[%s0 + $0x10] sm:$0xff]
  %v23 = vld [vmem:[%s0 + $0x18] sm:$0xff]
  %v24 = vld [vmem:[%s0 + $0x20] sm:$0xff]
  %v25 = vld [vmem:[%s0 + $0x28] sm:$0xff]
  %v26 = vld [vmem:[%s0 + $0x30] sm:$0xff]
  %v27 = vld [vmem:[%s0 + $0x38] sm:$0xff]
  %v28 = vld [vmem:[%s1] sm:$0xff]
  %v29 = vpack.c.bf16 %v20, %v20
  %v30 = vpack.c.bf16 %v21, %v21
  %v31 = vpack.c.bf16 %v22, %v22
  %v32 = vpack.c.bf16 %v23, %v23
  %v33 = vpack.c.bf16 %v24, %v24
  %v34 = vpack.c.bf16 %v25, %v25
  %v35 = vpack.c.bf16 %v26, %v26
  %v36 = vpack.c.bf16 %v27, %v27
  %v37 = vld [vmem:[%s2] sm:$0xff]
  %v38 = vld [vmem:[%s2 + $0x8] sm:$0xff]
  %v39 = vld [vmem:[%s2 + $0x10] sm:$0xff]
  %v40 = vld [vmem:[%s2 + $0x18] sm:$0xff]
  %v41 = vld [vmem:[%s2 + $0x20] sm:$0xff]
  %v42 = vld [vmem:[%s2 + $0x28] sm:$0xff]
  %v43 = vld [vmem:[%s2 + $0x30] sm:$0xff]
  %v44 = vld [vmem:[%s2 + $0x38] sm:$0xff]
  %v45 = vld [vmem:[%s2 + $0x40] sm:$0xff]
  %v46 = vld [vmem:[%s2 + $0x48] sm:$0xff]
  %v47 = vld [vmem:[%s2 + $0x50] sm:$0xff]
  %v48 = vld [vmem:[%s2 + $0x58] sm:$0xff]
  %v49 = vld [vmem:[%s2 + $0x60] sm:$0xff]
  %v50 = vld [vmem:[%s2 + $0x68] sm:$0xff]
  %v51 = vld [vmem:[%s2 + $0x70] sm:$0xff]
  %v52 = vld [vmem:[%s2 + $0x78] sm:$0xff]
  %v53 = vld [vmem:[%s2 + $0x80] sm:$0xff]
  %v54 = vld [vmem:[%s2 + $0x88] sm:$0xff]
  %v55 = vld [vmem:[%s2 + $0x90] sm:$0xff]
  %v56 = vld [vmem:[%s2 + $0x98] sm:$0xff]
  %v57 = vld [vmem:[%s2 + $0xa0] sm:$0xff]
  %v58 = vld [vmem:[%s2 + $0xa8] sm:$0xff]
  %v59 = vld [vmem:[%s2 + $0xb0] sm:$0xff]
  %v60 = vld [vmem:[%s2 + $0xb8] sm:$0xff]
  %v61 = vld [vmem:[%s2 + $0xc0] sm:$0xff]
  %v62 = vld [vmem:[%s2 + $0xc8] sm:$0xff]
  %v63 = vld [vmem:[%s2 + $0xd0] sm:$0xff]
  %v64 = vld [vmem:[%s2 + $0xd8] sm:$0xff]
  %v65 = vld [vmem:[%s2 + $0xe0] sm:$0xff]
  %v66 = vld [vmem:[%s2 + $0xe8] sm:$0xff]
  %v67 = vld [vmem:[%s2 + $0xf0] sm:$0xff]
  %v68 = vld [vmem:[%s2 + $0xf8] sm:$0xff]
  %v69 = vld [vmem:[%s2 + $0x100] sm:$0xff]
  %v70 = vld [vmem:[%s2 + $0x108] sm:$0xff]
  %v71 = vld [vmem:[%s2 + $0x110] sm:$0xff]
  %v72 = vld [vmem:[%s2 + $0x118] sm:$0xff]
  %v73 = vld [vmem:[%s2 + $0x120] sm:$0xff]
  %v74 = vld [vmem:[%s2 + $0x128] sm:$0xff]
  %v75 = vld [vmem:[%s2 + $0x130] sm:$0xff]
  %v76 = vld [vmem:[%s2 + $0x138] sm:$0xff]
  %v77 = vld [vmem:[%s2 + $0x140] sm:$0xff]
  %v78 = vld [vmem:[%s2 + $0x148] sm:$0xff]
  %v79 = vld [vmem:[%s2 + $0x150] sm:$0xff]
  %v80 = vld [vmem:[%s2 + $0x158] sm:$0xff]
  %v81 = vld [vmem:[%s2 + $0x160] sm:$0xff]
  %v82 = vld [vmem:[%s2 + $0x168] sm:$0xff]
  %v83 = vld [vmem:[%s2 + $0x170] sm:$0xff]
  %v84 = vld [vmem:[%s2 + $0x178] sm:$0xff]
  %v85 = vld [vmem:[%s2 + $0x180] sm:$0xff]
  %v86 = vld [vmem:[%s2 + $0x188] sm:$0xff]
  %v87 = vld [vmem:[%s2 + $0x190] sm:$0xff]
  %v88 = vld [vmem:[%s2 + $0x198] sm:$0xff]
  %v89 = vld [vmem:[%s2 + $0x1a0] sm:$0xff]
  %v90 = vld [vmem:[%s2 + $0x1a8] sm:$0xff]
  %v91 = vld [vmem:[%s2 + $0x1b0] sm:$0xff]
  %v92 = vld [vmem:[%s2 + $0x1b8] sm:$0xff]
  %v93 = vld [vmem:[%s2 + $0x1c0] sm:$0xff]
  %v94 = vld [vmem:[%s2 + $0x1c8] sm:$0xff]
  %v95 = vld [vmem:[%s2 + $0x1d0] sm:$0xff]
  %v96 = vld [vmem:[%s2 + $0x1d8] sm:$0xff]
  %v97 = vld [vmem:[%s2 + $0x1e0] sm:$0xff]
  %v98 = vld [vmem:[%s2 + $0x1e8] sm:$0xff]
  %v99 = vld [vmem:[%s2 + $0x1f0] sm:$0xff]
  %v100 = vld [vmem:[%s2 + $0x1f8] sm:$0xff]
  %v101 = vld [vmem:[%s2 + $0x200] sm:$0xff]
  %v102 = vld [vmem:[%s2 + $0x208] sm:$0xff]
  %v103 = vld [vmem:[%s2 + $0x210] sm:$0xff]
  %v104 = vld [vmem:[%s2 + $0x218] sm:$0xff]
  %v105 = vld [vmem:[%s2 + $0x220] sm:$0xff]
  %v106 = vld [vmem:[%s2 + $0x228] sm:$0xff]
  %v107 = vld [vmem:[%s2 + $0x230] sm:$0xff]
  %v108 = vld [vmem:[%s2 + $0x238] sm:$0xff]
  %v109 = vld [vmem:[%s2 + $0x240] sm:$0xff]
  %v110 = vld [vmem:[%s2 + $0x248] sm:$0xff]
  %v111 = vld [vmem:[%s2 + $0x250] sm:$0xff]
  %v112 = vld [vmem:[%s2 + $0x258] sm:$0xff]
  %v113 = vld [vmem:[%s2 + $0x260] sm:$0xff]
  %v114 = vld [vmem:[%s2 + $0x268] sm:$0xff]
  %v115 = vld [vmem:[%s2 + $0x270] sm:$0xff]
  %v116 = vld [vmem:[%s2 + $0x278] sm:$0xff]
  %v117 = vld [vmem:[%s2 + $0x280] sm:$0xff]
  %v118 = vld [vmem:[%s2 + $0x288] sm:$0xff]
  %v119 = vld [vmem:[%s2 + $0x290] sm:$0xff]
  %v120 = vld [vmem:[%s2 + $0x298] sm:$0xff]
  %v121 = vld [vmem:[%s2 + $0x2a0] sm:$0xff]
  %v122 = vld [vmem:[%s2 + $0x2a8] sm:$0xff]
  %v123 = vld [vmem:[%s2 + $0x2b0] sm:$0xff]
  %v124 = vld [vmem:[%s2 + $0x2b8] sm:$0xff]
  %v125 = vld [vmem:[%s2 + $0x2c0] sm:$0xff]
  %v126 = vld [vmem:[%s2 + $0x2c8] sm:$0xff]
  %v127 = vld [vmem:[%s2 + $0x2d0] sm:$0xff]
  %v128 = vld [vmem:[%s2 + $0x2d8] sm:$0xff]
  %v129 = vld [vmem:[%s2 + $0x2e0] sm:$0xff]
  %v130 = vld [vmem:[%s2 + $0x2e8] sm:$0xff]
  %v131 = vld [vmem:[%s2 + $0x2f0] sm:$0xff]
  %v132 = vld [vmem:[%s2 + $0x2f8] sm:$0xff]
  %v133 = vld [vmem:[%s2 + $0x300] sm:$0xff]
  %v134 = vld [vmem:[%s2 + $0x308] sm:$0xff]
  %v135 = vld [vmem:[%s2 + $0x310] sm:$0xff]
  %v136 = vld [vmem:[%s2 + $0x318] sm:$0xff]
  %v137 = vld [vmem:[%s2 + $0x320] sm:$0xff]
  %v138 = vld [vmem:[%s2 + $0x328] sm:$0xff]
  %v139 = vld [vmem:[%s2 + $0x330] sm:$0xff]
  %v140 = vld [vmem:[%s2 + $0x338] sm:$0xff]
  %v141 = vld [vmem:[%s2 + $0x340] sm:$0xff]
  %v142 = vld [vmem:[%s2 + $0x348] sm:$0xff]
  %v143 = vld [vmem:[%s2 + $0x350] sm:$0xff]
  %v144 = vld [vmem:[%s2 + $0x358] sm:$0xff]
  %v145 = vld [vmem:[%s2 + $0x360] sm:$0xff]
  %v146 = vld [vmem:[%s2 + $0x368] sm:$0xff]
  %v147 = vld [vmem:[%s2 + $0x370] sm:$0xff]
  %v148 = vld [vmem:[%s2 + $0x378] sm:$0xff]
  %v149 = vld [vmem:[%s2 + $0x380] sm:$0xff]
  %v150 = vld [vmem:[%s2 + $0x388] sm:$0xff]
  %v151 = vld [vmem:[%s2 + $0x390] sm:$0xff]
  %v152 = vld [vmem:[%s2 + $0x398] sm:$0xff]
  %v153 = vld [vmem:[%s2 + $0x3a0] sm:$0xff]
  %v154 = vld [vmem:[%s2 + $0x3a8] sm:$0xff]
  %v155 = vld [vmem:[%s2 + $0x3b0] sm:$0xff]
  %v156 = vld [vmem:[%s2 + $0x3b8] sm:$0xff]
  %v157 = vld [vmem:[%s2 + $0x3c0] sm:$0xff]
  %v158 = vld [vmem:[%s2 + $0x3c8] sm:$0xff]
  %v159 = vld [vmem:[%s2 + $0x3d0] sm:$0xff]
  %v160 = vld [vmem:[%s2 + $0x3d8] sm:$0xff]
  %v161 = vld [vmem:[%s2 + $0x3e0] sm:$0xff]
  %v162 = vld [vmem:[%s2 + $0x3e8] sm:$0xff]
  %v163 = vld [vmem:[%s2 + $0x3f0] sm:$0xff]
  %v164 = vld [vmem:[%s2 + $0x3f8] sm:$0xff]
  %v165 = vld [vmem:[%s4] ss:$8 sm:$0x3]
  %v167 = vlaneseq
  %v168 = vshrl.u32 %v167, 7
  %v169 = vsub.s32 0, %v168
  %v170 = vrot.slane %v165, %v169
  %v171 = vlaneseq
  %v172 = vshrl.u32 %v171, 7
  %v173 = vsub.s32 1, %v172
  %v174 = vrot.slane %v165, %v173
  %v305 = vunpack.c.l.b16 %v37
  %v306 = vunpack.c.h.b16 %v37
  %v307 = vunpack.c.l.b16 %v38
  %v308 = vunpack.c.h.b16 %v38
  %v309 = vunpack.c.l.b16 %v39
  %v310 = vunpack.c.h.b16 %v39
  %v311 = vunpack.c.l.b16 %v40
  %v312 = vunpack.c.h.b16 %v40
  %v313 = vunpack.c.l.b16 %v41
  %v314 = vunpack.c.h.b16 %v41
  %v315 = vunpack.c.l.b16 %v42
  %v316 = vunpack.c.h.b16 %v42
  %v317 = vunpack.c.l.b16 %v43
  %v318 = vunpack.c.h.b16 %v43
  %v319 = vunpack.c.l.b16 %v44
  %v320 = vunpack.c.h.b16 %v44
  %v321 = vunpack.c.l.b16 %v45
  %v322 = vunpack.c.h.b16 %v45
  %v323 = vunpack.c.l.b16 %v46
  %v324 = vunpack.c.h.b16 %v46
  %v325 = vunpack.c.l.b16 %v47
  %v326 = vunpack.c.h.b16 %v47
  %v327 = vunpack.c.l.b16 %v48
  %v328 = vunpack.c.h.b16 %v48
  %v329 = vunpack.c.l.b16 %v49
  %v330 = vunpack.c.h.b16 %v49
  %v331 = vunpack.c.l.b16 %v50
  %v332 = vunpack.c.h.b16 %v50
  %v333 = vunpack.c.l.b16 %v51
  %v334 = vunpack.c.h.b16 %v51
  %v335 = vunpack.c.l.b16 %v52
  %v336 = vunpack.c.h.b16 %v52
  %v337 = vunpack.c.l.b16 %v53
  %v338 = vunpack.c.h.b16 %v53
  %v339 = vunpack.c.l.b16 %v54
  %v340 = vunpack.c.h.b16 %v54
  %v341 = vunpack.c.l.b16 %v55
  %v342 = vunpack.c.h.b16 %v55
  %v343 = vunpack.c.l.b16 %v56
  %v344 = vunpack.c.h.b16 %v56
  %v345 = vunpack.c.l.b16 %v57
  %v346 = vunpack.c.h.b16 %v57
  %v347 = vunpack.c.l.b16 %v58
  %v348 = vunpack.c.h.b16 %v58
  %v349 = vunpack.c.l.b16 %v59
  %v350 = vunpack.c.h.b16 %v59
  %v351 = vunpack.c.l.b16 %v60
  %v352 = vunpack.c.h.b16 %v60
  %v353 = vunpack.c.l.b16 %v61
  %v354 = vunpack.c.h.b16 %v61
  %v355 = vunpack.c.l.b16 %v62
  %v356 = vunpack.c.h.b16 %v62
  %v357 = vunpack.c.l.b16 %v63
  %v358 = vunpack.c.h.b16 %v63
  %v359 = vunpack.c.l.b16 %v64
  %v360 = vunpack.c.h.b16 %v64
  %v361 = vunpack.c.l.b16 %v65
  %v362 = vunpack.c.h.b16 %v65
  %v363 = vunpack.c.l.b16 %v66
  %v364 = vunpack.c.h.b16 %v66
  %v365 = vunpack.c.l.b16 %v67
  %v366 = vunpack.c.h.b16 %v67
  %v367 = vunpack.c.l.b16 %v68
  %v368 = vunpack.c.h.b16 %v68
  %v369 = vunpack.c.l.b16 %v69
  %v370 = vunpack.c.h.b16 %v69
  %v371 = vunpack.c.l.b16 %v70
  %v372 = vunpack.c.h.b16 %v70
  %v373 = vunpack.c.l.b16 %v71
  %v374 = vunpack.c.h.b16 %v71
  %v375 = vunpack.c.l.b16 %v72
  %v376 = vunpack.c.h.b16 %v72
  %v377 = vunpack.c.l.b16 %v73
  %v378 = vunpack.c.h.b16 %v73
  %v379 = vunpack.c.l.b16 %v74
  %v380 = vunpack.c.h.b16 %v74
  %v381 = vunpack.c.l.b16 %v75
  %v382 = vunpack.c.h.b16 %v75
  %v383 = vunpack.c.l.b16 %v76
  %v384 = vunpack.c.h.b16 %v76
  %v385 = vunpack.c.l.b16 %v77
  %v386 = vunpack.c.h.b16 %v77
  %v387 = vunpack.c.l.b16 %v78
  %v388 = vunpack.c.h.b16 %v78
  %v389 = vunpack.c.l.b16 %v79
  %v390 = vunpack.c.h.b16 %v79
  %v391 = vunpack.c.l.b16 %v80
  %v392 = vunpack.c.h.b16 %v80
  %v393 = vunpack.c.l.b16 %v81
  %v394 = vunpack.c.h.b16 %v81
  %v395 = vunpack.c.l.b16 %v82
  %v396 = vunpack.c.h.b16 %v82
  %v397 = vunpack.c.l.b16 %v83
  %v398 = vunpack.c.h.b16 %v83
  %v399 = vunpack.c.l.b16 %v84
  %v400 = vunpack.c.h.b16 %v84
  %v401 = vunpack.c.l.b16 %v85
  %v402 = vunpack.c.h.b16 %v85
  %v403 = vunpack.c.l.b16 %v86
  %v404 = vunpack.c.h.b16 %v86
  %v405 = vunpack.c.l.b16 %v87
  %v406 = vunpack.c.h.b16 %v87
  %v407 = vunpack.c.l.b16 %v88
  %v408 = vunpack.c.h.b16 %v88
  %v409 = vunpack.c.l.b16 %v89
  %v410 = vunpack.c.h.b16 %v89
  %v411 = vunpack.c.l.b16 %v90
  %v412 = vunpack.c.h.b16 %v90
  %v413 = vunpack.c.l.b16 %v91
  %v414 = vunpack.c.h.b16 %v91
  %v415 = vunpack.c.l.b16 %v92
  %v416 = vunpack.c.h.b16 %v92
  %v417 = vunpack.c.l.b16 %v93
  %v418 = vunpack.c.h.b16 %v93
  %v419 = vunpack.c.l.b16 %v94
  %v420 = vunpack.c.h.b16 %v94
  %v421 = vunpack.c.l.b16 %v95
  %v422 = vunpack.c.h.b16 %v95
  %v423 = vunpack.c.l.b16 %v96
  %v424 = vunpack.c.h.b16 %v96
  %v425 = vunpack.c.l.b16 %v97
  %v426 = vunpack.c.h.b16 %v97
  %v427 = vunpack.c.l.b16 %v98
  %v428 = vunpack.c.h.b16 %v98
  %v429 = vunpack.c.l.b16 %v99
  %v430 = vunpack.c.h.b16 %v99
  %v431 = vunpack.c.l.b16 %v100
  %v432 = vunpack.c.h.b16 %v100
  %v433 = vunpack.c.l.b16 %v101
  %v434 = vunpack.c.h.b16 %v101
  %v435 = vunpack.c.l.b16 %v102
  %v436 = vunpack.c.h.b16 %v102
  %v437 = vunpack.c.l.b16 %v103
  %v438 = vunpack.c.h.b16 %v103
  %v439 = vunpack.c.l.b16 %v104
  %v440 = vunpack.c.h.b16 %v104
  %v441 = vunpack.c.l.b16 %v105
  %v442 = vunpack.c.h.b16 %v105
  %v443 = vunpack.c.l.b16 %v106
  %v444 = vunpack.c.h.b16 %v106
  %v445 = vunpack.c.l.b16 %v107
  %v446 = vunpack.c.h.b16 %v107
  %v447 = vunpack.c.l.b16 %v108
  %v448 = vunpack.c.h.b16 %v108
  %v449 = vunpack.c.l.b16 %v109
  %v450 = vunpack.c.h.b16 %v109
  %v451 = vunpack.c.l.b16 %v110
  %v452 = vunpack.c.h.b16 %v110
  %v453 = vunpack.c.l.b16 %v111
  %v454 = vunpack.c.h.b16 %v111
  %v455 = vunpack.c.l.b16 %v112
  %v456 = vunpack.c.h.b16 %v112
  %v457 = vunpack.c.l.b16 %v113
  %v458 = vunpack.c.h.b16 %v113
  %v459 = vunpack.c.l.b16 %v114
  %v460 = vunpack.c.h.b16 %v114
  %v461 = vunpack.c.l.b16 %v115
  %v462 = vunpack.c.h.b16 %v115
  %v463 = vunpack.c.l.b16 %v116
  %v464 = vunpack.c.h.b16 %v116
  %v465 = vunpack.c.l.b16 %v117
  %v466 = vunpack.c.h.b16 %v117
  %v467 = vunpack.c.l.b16 %v118
  %v468 = vunpack.c.h.b16 %v118
  %v469 = vunpack.c.l.b16 %v119
  %v470 = vunpack.c.h.b16 %v119
  %v471 = vunpack.c.l.b16 %v120
  %v472 = vunpack.c.h.b16 %v120
  %v473 = vunpack.c.l.b16 %v121
  %v474 = vunpack.c.h.b16 %v121
  %v475 = vunpack.c.l.b16 %v122
  %v476 = vunpack.c.h.b16 %v122
  %v477 = vunpack.c.l.b16 %v123
  %v478 = vunpack.c.h.b16 %v123
  %v479 = vunpack.c.l.b16 %v124
  %v480 = vunpack.c.h.b16 %v124
  %v481 = vunpack.c.l.b16 %v125
  %v482 = vunpack.c.h.b16 %v125
  %v483 = vunpack.c.l.b16 %v126
  %v484 = vunpack.c.h.b16 %v126
  %v485 = vunpack.c.l.b16 %v127
  %v486 = vunpack.c.h.b16 %v127
  %v487 = vunpack.c.l.b16 %v128
  %v488 = vunpack.c.h.b16 %v128
  %v489 = vunpack.c.l.b16 %v129
  %v490 = vunpack.c.h.b16 %v129
  %v491 = vunpack.c.l.b16 %v130
  %v492 = vunpack.c.h.b16 %v130
  %v493 = vunpack.c.l.b16 %v131
  %v494 = vunpack.c.h.b16 %v131
  %v495 = vunpack.c.l.b16 %v132
  %v496 = vunpack.c.h.b16 %v132
  %v497 = vunpack.c.l.b16 %v133
  %v498 = vunpack.c.h.b16 %v133
  %v499 = vunpack.c.l.b16 %v134
  %v500 = vunpack.c.h.b16 %v134
  %v501 = vunpack.c.l.b16 %v135
  %v502 = vunpack.c.h.b16 %v135
  %v503 = vunpack.c.l.b16 %v136
  %v504 = vunpack.c.h.b16 %v136
  %v505 = vunpack.c.l.b16 %v137
  %v506 = vunpack.c.h.b16 %v137
  %v507 = vunpack.c.l.b16 %v138
  %v508 = vunpack.c.h.b16 %v138
  %v509 = vunpack.c.l.b16 %v139
  %v510 = vunpack.c.h.b16 %v139
  %v511 = vunpack.c.l.b16 %v140
  %v512 = vunpack.c.h.b16 %v140
  %v513 = vunpack.c.l.b16 %v141
  %v514 = vunpack.c.h.b16 %v141
  %v515 = vunpack.c.l.b16 %v142
  %v516 = vunpack.c.h.b16 %v142
  %v517 = vunpack.c.l.b16 %v143
  %v518 = vunpack.c.h.b16 %v143
  %v519 = vunpack.c.l.b16 %v144
  %v520 = vunpack.c.h.b16 %v144
  %v521 = vunpack.c.l.b16 %v145
  %v522 = vunpack.c.h.b16 %v145
  %v523 = vunpack.c.l.b16 %v146
  %v524 = vunpack.c.h.b16 %v146
  %v525 = vunpack.c.l.b16 %v147
  %v526 = vunpack.c.h.b16 %v147
  %v527 = vunpack.c.l.b16 %v148
  %v528 = vunpack.c.h.b16 %v148
  %v529 = vunpack.c.l.b16 %v149
  %v530 = vunpack.c.h.b16 %v149
  %v531 = vunpack.c.l.b16 %v150
  %v532 = vunpack.c.h.b16 %v150
  %v533 = vunpack.c.l.b16 %v151
  %v534 = vunpack.c.h.b16 %v151
  %v535 = vunpack.c.l.b16 %v152
  %v536 = vunpack.c.h.b16 %v152
  %v537 = vunpack.c.l.b16 %v153
  %v538 = vunpack.c.h.b16 %v153
  %v539 = vunpack.c.l.b16 %v154
  %v540 = vunpack.c.h.b16 %v154
  %v541 = vunpack.c.l.b16 %v155
  %v542 = vunpack.c.h.b16 %v155
  %v543 = vunpack.c.l.b16 %v156
  %v544 = vunpack.c.h.b16 %v156
  %v545 = vunpack.c.l.b16 %v157
  %v546 = vunpack.c.h.b16 %v157
  %v547 = vunpack.c.l.b16 %v158
  %v548 = vunpack.c.h.b16 %v158
  %v549 = vunpack.c.l.b16 %v159
  %v550 = vunpack.c.h.b16 %v159
  %v551 = vunpack.c.l.b16 %v160
  %v552 = vunpack.c.h.b16 %v160
  %v553 = vunpack.c.l.b16 %v161
  %v554 = vunpack.c.h.b16 %v161
  %v555 = vunpack.c.l.b16 %v162
  %v556 = vunpack.c.h.b16 %v162
  %v557 = vunpack.c.l.b16 %v163
  %v558 = vunpack.c.h.b16 %v163
  %v559 = vunpack.c.l.b16 %v164
  %v560 = vunpack.c.h.b16 %v164
  %v561 = vpack.c.b16 %v307, %v305
  %v562 = vpack.c.b16 %v308, %v306
  %v563 = vpack.c.b16 %v311, %v309
  %v564 = vpack.c.b16 %v312, %v310
  %v565 = vpack.c.b16 %v315, %v313
  %v566 = vpack.c.b16 %v316, %v314
  %v567 = vpack.c.b16 %v319, %v317
  %v568 = vpack.c.b16 %v320, %v318
  %v569 = vpack.c.b16 %v323, %v321
  %v570 = vpack.c.b16 %v324, %v322
  %v571 = vpack.c.b16 %v327, %v325
  %v572 = vpack.c.b16 %v328, %v326
  %v573 = vpack.c.b16 %v331, %v329
  %v574 = vpack.c.b16 %v332, %v330
  %v575 = vpack.c.b16 %v335, %v333
  %v576 = vpack.c.b16 %v336, %v334
  %v577 = vpack.c.b16 %v339, %v337
  %v578 = vpack.c.b16 %v340, %v338
  %v579 = vpack.c.b16 %v343, %v341
  %v580 = vpack.c.b16 %v344, %v342
  %v581 = vpack.c.b16 %v347, %v345
  %v582 = vpack.c.b16 %v348, %v346
  %v583 = vpack.c.b16 %v351, %v349
  %v584 = vpack.c.b16 %v352, %v350
  %v585 = vpack.c.b16 %v355, %v353
  %v586 = vpack.c.b16 %v356, %v354
  %v587 = vpack.c.b16 %v359, %v357
  %v588 = vpack.c.b16 %v360, %v358
  %v589 = vpack.c.b16 %v363, %v361
  %v590 = vpack.c.b16 %v364, %v362
  %v591 = vpack.c.b16 %v367, %v365
  %v592 = vpack.c.b16 %v368, %v366
  %v593 = vpack.c.b16 %v371, %v369
  %v594 = vpack.c.b16 %v372, %v370
  %v595 = vpack.c.b16 %v375, %v373
  %v596 = vpack.c.b16 %v376, %v374
  %v597 = vpack.c.b16 %v379, %v377
  %v598 = vpack.c.b16 %v380, %v378
  %v599 = vpack.c.b16 %v383, %v381
  %v600 = vpack.c.b16 %v384, %v382
  %v601 = vpack.c.b16 %v387, %v385
  %v602 = vpack.c.b16 %v388, %v386
  %v603 = vpack.c.b16 %v391, %v389
  %v604 = vpack.c.b16 %v392, %v390
  %v605 = vpack.c.b16 %v395, %v393
  %v606 = vpack.c.b16 %v396, %v394
  %v607 = vpack.c.b16 %v399, %v397
  %v608 = vpack.c.b16 %v400, %v398
  %v609 = vpack.c.b16 %v403, %v401
  %v610 = vpack.c.b16 %v404, %v402
  %v611 = vpack.c.b16 %v407, %v405
  %v612 = vpack.c.b16 %v408, %v406
  %v613 = vpack.c.b16 %v411, %v409
  %v614 = vpack.c.b16 %v412, %v410
  %v615 = vpack.c.b16 %v415, %v413
  %v616 = vpack.c.b16 %v416, %v414
  %v617 = vpack.c.b16 %v419, %v417
  %v618 = vpack.c.b16 %v420, %v418
  %v619 = vpack.c.b16 %v423, %v421
  %v620 = vpack.c.b16 %v424, %v422
  %v621 = vpack.c.b16 %v427, %v425
  %v622 = vpack.c.b16 %v428, %v426
  %v623 = vpack.c.b16 %v431, %v429
  %v624 = vpack.c.b16 %v432, %v430
  %v625 = vpack.c.b16 %v435, %v433
  %v626 = vpack.c.b16 %v436, %v434
  %v627 = vpack.c.b16 %v439, %v437
  %v628 = vpack.c.b16 %v440, %v438
  %v629 = vpack.c.b16 %v443, %v441
  %v630 = vpack.c.b16 %v444, %v442
  %v631 = vpack.c.b16 %v447, %v445
  %v632 = vpack.c.b16 %v448, %v446
  %v633 = vpack.c.b16 %v451, %v449
  %v634 = vpack.c.b16 %v452, %v450
  %v635 = vpack.c.b16 %v455, %v453
  %v636 = vpack.c.b16 %v456, %v454
  %v637 = vpack.c.b16 %v459, %v457
  %v638 = vpack.c.b16 %v460, %v458
  %v639 = vpack.c.b16 %v463, %v461
  %v640 = vpack.c.b16 %v464, %v462
  %v641 = vpack.c.b16 %v467, %v465
  %v642 = vpack.c.b16 %v468, %v466
  %v643 = vpack.c.b16 %v471, %v469
  %v644 = vpack.c.b16 %v472, %v470
  %v645 = vpack.c.b16 %v475, %v473
  %v646 = vpack.c.b16 %v476, %v474
  %v647 = vpack.c.b16 %v479, %v477
  %v648 = vpack.c.b16 %v480, %v478
  %v649 = vpack.c.b16 %v483, %v481
  %v650 = vpack.c.b16 %v484, %v482
  %v651 = vpack.c.b16 %v487, %v485
  %v652 = vpack.c.b16 %v488, %v486
  %v653 = vpack.c.b16 %v491, %v489
  %v654 = vpack.c.b16 %v492, %v490
  %v655 = vpack.c.b16 %v495, %v493
  %v656 = vpack.c.b16 %v496, %v494
  %v657 = vpack.c.b16 %v499, %v497
  %v658 = vpack.c.b16 %v500, %v498
  %v659 = vpack.c.b16 %v503, %v501
  %v660 = vpack.c.b16 %v504, %v502
  %v661 = vpack.c.b16 %v507, %v505
  %v662 = vpack.c.b16 %v508, %v506
  %v663 = vpack.c.b16 %v511, %v509
  %v664 = vpack.c.b16 %v512, %v510
  %v665 = vpack.c.b16 %v515, %v513
  %v666 = vpack.c.b16 %v516, %v514
  %v667 = vpack.c.b16 %v519, %v517
  %v668 = vpack.c.b16 %v520, %v518
  %v669 = vpack.c.b16 %v523, %v521
  %v670 = vpack.c.b16 %v524, %v522
  %v671 = vpack.c.b16 %v527, %v525
  %v672 = vpack.c.b16 %v528, %v526
  %v673 = vpack.c.b16 %v531, %v529
  %v674 = vpack.c.b16 %v532, %v530
  %v675 = vpack.c.b16 %v535, %v533
  %v676 = vpack.c.b16 %v536, %v534
  %v677 = vpack.c.b16 %v539, %v537
  %v678 = vpack.c.b16 %v540, %v538
  %v679 = vpack.c.b16 %v543, %v541
  %v680 = vpack.c.b16 %v544, %v542
  %v681 = vpack.c.b16 %v547, %v545
  %v682 = vpack.c.b16 %v548, %v546
  %v683 = vpack.c.b16 %v551, %v549
  %v684 = vpack.c.b16 %v552, %v550
  %v685 = vpack.c.b16 %v555, %v553
  %v686 = vpack.c.b16 %v556, %v554
  %v687 = vpack.c.b16 %v559, %v557
  %v688 = vpack.c.b16 %v560, %v558
  %817 = vmatprep.subr.bf16.mxu0 %v576
  %818 = vmatpush1.bf16.msra.mxu0 %v575
  %819 = vmatprep.subr.bf16.mxu0 %v574
  %820 = vmatpush1.bf16.msra.mxu0 %v573
  %821 = vmatprep.subr.bf16.mxu0 %v572
  %822 = vmatpush1.bf16.msra.mxu0 %v571
  %823 = vmatprep.subr.bf16.mxu0 %v570
  %824 = vmatpush1.bf16.msra.mxu0 %v569
  %825 = vmatprep.subr.bf16.mxu0 %v568
  %826 = vmatpush1.bf16.msra.mxu0 %v567
  %827 = vmatprep.subr.bf16.mxu0 %v566
  %828 = vmatpush1.bf16.msra.mxu0 %v565
  %829 = vmatprep.subr.bf16.mxu0 %v564
  %830 = vmatpush1.bf16.msra.mxu0 %v563
  %831 = vmatprep.subr.bf16.mxu0 %v562
  %832 = vmatpush1.bf16.msra.mxu0 %v561
  %833 = vmatprep.subr.bf16.mxu0 %v592
  %834 = vmatpush2.bf16.msra.mxu0 %v591
  %835 = vmatprep.subr.bf16.mxu0 %v590
  %836 = vmatpush2.bf16.msra.mxu0 %v589
  %837 = vmatprep.subr.bf16.mxu0 %v588
  %838 = vmatpush2.bf16.msra.mxu0 %v587
  %839 = vmatprep.subr.bf16.mxu0 %v586
  %840 = vmatpush2.bf16.msra.mxu0 %v585
  %841 = vmatprep.subr.bf16.mxu0 %v584
  %842 = vmatpush2.bf16.msra.mxu0 %v583
  %843 = vmatprep.subr.bf16.mxu0 %v582
  %844 = vmatpush2.bf16.msra.mxu0 %v581
  %845 = vmatprep.subr.bf16.mxu0 %v580
  %846 = vmatpush2.bf16.msra.mxu0 %v579
  %847 = vmatprep.subr.bf16.mxu0 %v578
  %848 = vmatpush2.bf16.msra.mxu0 %v577
  %849 = vmatprep.mubr.bf16.mxu0 %v30
  %850 = vmatmul.mubr.bf16.gmra.mxu0 %v29
  %v851 = vpop.f32.mrf.mxu0
  %v852 = vadd.f32 %v170, %v851
  %v853 = vpop.f32.mrf.mxu0
  %v854 = vadd.f32 %v174, %v853
  %v855 = vpop.f32.mrf.mxu0
  %v856 = vpop.f32.mrf.mxu0
  %857 = vdwg.mxu0
  %858 = vmatprep.subr.bf16.mxu0 %v608
  %859 = vmatpush1.bf16.msra.mxu0 %v607
  %860 = vmatprep.subr.bf16.mxu0 %v606
  %861 = vmatpush1.bf16.msra.mxu0 %v605
  %862 = vmatprep.subr.bf16.mxu0 %v604
  %863 = vmatpush1.bf16.msra.mxu0 %v603
  %864 = vmatprep.subr.bf16.mxu0 %v602
  %865 = vmatpush1.bf16.msra.mxu0 %v601
  %866 = vmatprep.subr.bf16.mxu0 %v600
  %867 = vmatpush1.bf16.msra.mxu0 %v599
  %868 = vmatprep.subr.bf16.mxu0 %v598
  %869 = vmatpush1.bf16.msra.mxu0 %v597
  %870 = vmatprep.subr.bf16.mxu0 %v596
  %871 = vmatpush1.bf16.msra.mxu0 %v595
  %872 = vmatprep.subr.bf16.mxu0 %v594
  %873 = vmatpush1.bf16.msra.mxu0 %v593
  %874 = vmatprep.subr.bf16.mxu0 %v624
  %875 = vmatpush2.bf16.msra.mxu0 %v623
  %876 = vmatprep.subr.bf16.mxu0 %v622
  %877 = vmatpush2.bf16.msra.mxu0 %v621
  %878 = vmatprep.subr.bf16.mxu0 %v620
  %879 = vmatpush2.bf16.msra.mxu0 %v619
  %880 = vmatprep.subr.bf16.mxu0 %v618
  %881 = vmatpush2.bf16.msra.mxu0 %v617
  %882 = vmatprep.subr.bf16.mxu0 %v616
  %883 = vmatpush2.bf16.msra.mxu0 %v615
  %884 = vmatprep.subr.bf16.mxu0 %v614
  %885 = vmatpush2.bf16.msra.mxu0 %v613
  %886 = vmatprep.subr.bf16.mxu0 %v612
  %887 = vmatpush2.bf16.msra.mxu0 %v611
  %888 = vmatprep.subr.bf16.mxu0 %v610
  %889 = vmatpush2.bf16.msra.mxu0 %v609
  %890 = vmatprep.mubr.bf16.mxu0 %v32
  %891 = vmatmul.mubr.bf16.gmra.mxu0 %v31
  %v892 = vpop.f32.mrf.mxu0
  %v893 = vadd.f32 %v852, %v892
  %v894 = vpop.f32.mrf.mxu0
  %v895 = vadd.f32 %v854, %v894
  %v896 = vpop.f32.mrf.mxu0
  %v897 = vpop.f32.mrf.mxu0
  %898 = vdwg.mxu0
  %899 = vmatprep.subr.bf16.mxu0 %v640
  %900 = vmatpush1.bf16.msra.mxu0 %v639
  %901 = vmatprep.subr.bf16.mxu0 %v638
  %902 = vmatpush1.bf16.msra.mxu0 %v637
  %903 = vmatprep.subr.bf16.mxu0 %v636
  %904 = vmatpush1.bf16.msra.mxu0 %v635
  %905 = vmatprep.subr.bf16.mxu0 %v634
  %906 = vmatpush1.bf16.msra.mxu0 %v633
  %907 = vmatprep.subr.bf16.mxu0 %v632
  %908 = vmatpush1.bf16.msra.mxu0 %v631
  %909 = vmatprep.subr.bf16.mxu0 %v630
  %910 = vmatpush1.bf16.msra.mxu0 %v629
  %911 = vmatprep.subr.bf16.mxu0 %v628
  %912 = vmatpush1.bf16.msra.mxu0 %v627
  %913 = vmatprep.subr.bf16.mxu0 %v626
  %914 = vmatpush1.bf16.msra.mxu0 %v625
  %915 = vmatprep.subr.bf16.mxu0 %v656
  %916 = vmatpush2.bf16.msra.mxu0 %v655
  %917 = vmatprep.subr.bf16.mxu0 %v654
  %918 = vmatpush2.bf16.msra.mxu0 %v653
  %919 = vmatprep.subr.bf16.mxu0 %v652
  %920 = vmatpush2.bf16.msra.mxu0 %v651
  %921 = vmatprep.subr.bf16.mxu0 %v650
  %922 = vmatpush2.bf16.msra.mxu0 %v649
  %923 = vmatprep.subr.bf16.mxu0 %v648
  %924 = vmatpush2.bf16.msra.mxu0 %v647
  %925 = vmatprep.subr.bf16.mxu0 %v646
  %926 = vmatpush2.bf16.msra.mxu0 %v645
  %927 = vmatprep.subr.bf16.mxu0 %v644
  %928 = vmatpush2.bf16.msra.mxu0 %v643
  %929 = vmatprep.subr.bf16.mxu0 %v642
  %930 = vmatpush2.bf16.msra.mxu0 %v641
  %931 = vmatprep.mubr.bf16.mxu0 %v34
  %932 = vmatmul.mubr.bf16.gmra.mxu0 %v33
  %v933 = vpop.f32.mrf.mxu0
  %v934 = vadd.f32 %v893, %v933
  %v935 = vpop.f32.mrf.mxu0
  %v936 = vadd.f32 %v895, %v935
  %v937 = vpop.f32.mrf.mxu0
  %v938 = vpop.f32.mrf.mxu0
  %939 = vdwg.mxu0
  %940 = vmatprep.subr.bf16.mxu0 %v672
  %941 = vmatpush1.bf16.msra.mxu0 %v671
  %942 = vmatprep.subr.bf16.mxu0 %v670
  %943 = vmatpush1.bf16.msra.mxu0 %v669
  %944 = vmatprep.subr.bf16.mxu0 %v668
  %945 = vmatpush1.bf16.msra.mxu0 %v667
  %946 = vmatprep.subr.bf16.mxu0 %v666
  %947 = vmatpush1.bf16.msra.mxu0 %v665
  %948 = vmatprep.subr.bf16.mxu0 %v664
  %949 = vmatpush1.bf16.msra.mxu0 %v663
  %950 = vmatprep.subr.bf16.mxu0 %v662
  %951 = vmatpush1.bf16.msra.mxu0 %v661
  %952 = vmatprep.subr.bf16.mxu0 %v660
  %953 = vmatpush1.bf16.msra.mxu0 %v659
  %954 = vmatprep.subr.bf16.mxu0 %v658
  %955 = vmatpush1.bf16.msra.mxu0 %v657
  %956 = vmatprep.subr.bf16.mxu0 %v688
  %957 = vmatpush2.bf16.msra.mxu0 %v687
  %958 = vmatprep.subr.bf16.mxu0 %v686
  %959 = vmatpush2.bf16.msra.mxu0 %v685
  %960 = vmatprep.subr.bf16.mxu0 %v684
  %961 = vmatpush2.bf16.msra.mxu0 %v683
  %962 = vmatprep.subr.bf16.mxu0 %v682
  %963 = vmatpush2.bf16.msra.mxu0 %v681
  %964 = vmatprep.subr.bf16.mxu0 %v680
  %965 = vmatpush2.bf16.msra.mxu0 %v679
  %966 = vmatprep.subr.bf16.mxu0 %v678
  %967 = vmatpush2.bf16.msra.mxu0 %v677
  %968 = vmatprep.subr.bf16.mxu0 %v676
  %969 = vmatpush2.bf16.msra.mxu0 %v675
  %970 = vmatprep.subr.bf16.mxu0 %v674
  %971 = vmatpush2.bf16.msra.mxu0 %v673
  %972 = vmatprep.mubr.bf16.mxu0 %v36
  %973 = vmatmul.mubr.bf16.gmra.mxu0 %v35
  %v974 = vpop.f32.mrf.mxu0
  %v975 = vadd.f32 %v934, %v974
  %v976 = vpop.f32.mrf.mxu0
  %v977 = vadd.f32 %v936, %v976
  %v978 = vpop.f32.mrf.mxu0
  %v979 = vpop.f32.mrf.mxu0
  %980 = vdwg.mxu0
  %v981 = vmax.f32 %v975, 0.0
  %v982 = vmax.f32 %v977, 0.0
  %v983 = vld [vmem:[%s3] sm:$0xff]
  %v984 = vld [vmem:[%s3 + $0x8] sm:$0xff]
  %v985 = vld [vmem:[%s3 + $0x10] sm:$0xff]
  %v986 = vld [vmem:[%s3 + $0x18] sm:$0xff]
  %v987 = vld [vmem:[%s3 + $0x20] sm:$0xff]
  %v988 = vld [vmem:[%s3 + $0x28] sm:$0xff]
  %v989 = vld [vmem:[%s3 + $0x30] sm:$0xff]
  %v990 = vld [vmem:[%s3 + $0x38] sm:$0xff]
  %v991 = vld [vmem:[%s3 + $0x40] sm:$0xff]
  %v992 = vld [vmem:[%s3 + $0x48] sm:$0xff]
  %v993 = vld [vmem:[%s3 + $0x50] sm:$0xff]
  %v994 = vld [vmem:[%s3 + $0x58] sm:$0xff]
  %v995 = vld [vmem:[%s3 + $0x60] sm:$0xff]
  %v996 = vld [vmem:[%s3 + $0x68] sm:$0xff]
  %v997 = vld [vmem:[%s3 + $0x70] sm:$0xff]
  %v998 = vld [vmem:[%s3 + $0x78] sm:$0xff]
  %v999 = vld [vmem:[%s3 + $0x80] sm:$0xff]
  %v1000 = vld [vmem:[%s3 + $0x88] sm:$0xff]
  %v1001 = vld [vmem:[%s3 + $0x90] sm:$0xff]
  %v1002 = vld [vmem:[%s3 + $0x98] sm:$0xff]
  %v1003 = vld [vmem:[%s3 + $0xa0] sm:$0xff]
  %v1004 = vld [vmem:[%s3 + $0xa8] sm:$0xff]
  %v1005 = vld [vmem:[%s3 + $0xb0] sm:$0xff]
  %v1006 = vld [vmem:[%s3 + $0xb8] sm:$0xff]
  %v1007 = vld [vmem:[%s3 + $0xc0] sm:$0xff]
  %v1008 = vld [vmem:[%s3 + $0xc8] sm:$0xff]
  %v1009 = vld [vmem:[%s3 + $0xd0] sm:$0xff]
  %v1010 = vld [vmem:[%s3 + $0xd8] sm:$0xff]
  %v1011 = vld [vmem:[%s3 + $0xe0] sm:$0xff]
  %v1012 = vld [vmem:[%s3 + $0xe8] sm:$0xff]
  %v1013 = vld [vmem:[%s3 + $0xf0] sm:$0xff]
  %v1014 = vld [vmem:[%s3 + $0xf8] sm:$0xff]
  %v1015 = vld [vmem:[%s4 + $0x1] ss:$0 sm:$0xff]
  %1016 = vmatprep.subr.mxu0 0.0
  %1017 = vmatpush1.msra.mxu0 %v998
  %1018 = vmatprep.subr.mxu0 0.0
  %1019 = vmatpush1.msra.mxu0 %v997
  %1020 = vmatprep.subr.mxu0 0.0
  %1021 = vmatpush1.msra.mxu0 %v996
  %1022 = vmatprep.subr.mxu0 0.0
  %1023 = vmatpush1.msra.mxu0 %v995
  %1024 = vmatprep.subr.mxu0 0.0
  %1025 = vmatpush1.msra.mxu0 %v994
  %1026 = vmatprep.subr.mxu0 0.0
  %1027 = vmatpush1.msra.mxu0 %v993
  %1028 = vmatprep.subr.mxu0 0.0
  %1029 = vmatpush1.msra.mxu0 %v992
  %1030 = vmatprep.subr.mxu0 0.0
  %1031 = vmatpush1.msra.mxu0 %v991
  %1032 = vmatprep.subr.mxu0 0.0
  %1033 = vmatpush1.msra.mxu0 %v990
  %1034 = vmatprep.subr.mxu0 0.0
  %1035 = vmatpush1.msra.mxu0 %v989
  %1036 = vmatprep.subr.mxu0 0.0
  %1037 = vmatpush1.msra.mxu0 %v988
  %1038 = vmatprep.subr.mxu0 0.0
  %1039 = vmatpush1.msra.mxu0 %v987
  %1040 = vmatprep.subr.mxu0 0.0
  %1041 = vmatpush1.msra.mxu0 %v986
  %1042 = vmatprep.subr.mxu0 0.0
  %1043 = vmatpush1.msra.mxu0 %v985
  %1044 = vmatprep.subr.mxu0 0.0
  %1045 = vmatpush1.msra.mxu0 %v984
  %1046 = vmatprep.subr.mxu0 0.0
  %1047 = vmatpush1.msra.mxu0 %v983
  %1048 = vmatprep.subr.mxu0 0.0
  %1049 = vmatpush2.msra.mxu0 %v1014
  %1050 = vmatprep.subr.mxu0 0.0
  %1051 = vmatpush2.msra.mxu0 %v1013
  %1052 = vmatprep.subr.mxu0 0.0
  %1053 = vmatpush2.msra.mxu0 %v1012
  %1054 = vmatprep.subr.mxu0 0.0
  %1055 = vmatpush2.msra.mxu0 %v1011
  %1056 = vmatprep.subr.mxu0 0.0
  %1057 = vmatpush2.msra.mxu0 %v1010
  %1058 = vmatprep.subr.mxu0 0.0
  %1059 = vmatpush2.msra.mxu0 %v1009
  %1060 = vmatprep.subr.mxu0 0.0
  %1061 = vmatpush2.msra.mxu0 %v1008
  %1062 = vmatprep.subr.mxu0 0.0
  %1063 = vmatpush2.msra.mxu0 %v1007
  %1064 = vmatprep.subr.mxu0 0.0
  %1065 = vmatpush2.msra.mxu0 %v1006
  %1066 = vmatprep.subr.mxu0 0.0
  %1067 = vmatpush2.msra.mxu0 %v1005
  %1068 = vmatprep.subr.mxu0 0.0
  %1069 = vmatpush2.msra.mxu0 %v1004
  %1070 = vmatprep.subr.mxu0 0.0
  %1071 = vmatpush2.msra.mxu0 %v1003
  %1072 = vmatprep.subr.mxu0 0.0
  %1073 = vmatpush2.msra.mxu0 %v1002
  %1074 = vmatprep.subr.mxu0 0.0
  %1075 = vmatpush2.msra.mxu0 %v1001
  %1076 = vmatprep.subr.mxu0 0.0
  %1077 = vmatpush2.msra.mxu0 %v1000
  %1078 = vmatprep.subr.mxu0 0.0
  %1079 = vmatpush2.msra.mxu0 %v999
  %1080 = vmatprep.mubr.f32.mxu0 %v982
  %1081 = vmatmul.mubr.f32.gmra.mxu0 %v981
  %v1082 = vpop.f32.mrf.mxu0
  %v1083 = vadd.f32 %v1015, %v1082
  %v1084 = vpop.f32.mrf.mxu0
  %1085 = vdwg.mxu0
  %v1086 = vld [vmem:[%s3 + $0x100] sm:$0xff]
  %v1087 = vld [vmem:[%s4 + $0x2] ss:$0 sm:$0xff]
  %vm1088 = vcmask 64512
  %v1090 = vsel %vm1088, %v28, 0
  %1092 = vmatprep.subr.mxu0 0.0
  %1093 = vmatpush1.msra.mxu0 0.0
  %1094 = vmatprep.subr.mxu0 0.0
  %1095 = vmatpush1.msra.mxu0 0.0
  %1096 = vmatprep.subr.mxu0 0.0
  %1097 = vmatpush1.msra.mxu0 0.0
  %1098 = vmatprep.subr.mxu0 0.0
  %1099 = vmatpush1.msra.mxu0 0.0
  %1100 = vmatprep.subr.mxu0 0.0
  %1101 = vmatpush1.msra.mxu0 0.0
  %1102 = vmatprep.subr.mxu0 0.0
  %1103 = vmatpush1.msra.mxu0 0.0
  %1104 = vmatprep.subr.mxu0 0.0
  %1105 = vmatpush1.msra.mxu0 0.0
  %1106 = vmatprep.subr.mxu0 0.0
  %1107 = vmatpush1.msra.mxu0 0.0
  %1108 = vmatprep.subr.mxu0 0.0
  %1109 = vmatpush1.msra.mxu0 0.0
  %1110 = vmatprep.subr.mxu0 0.0
  %1111 = vmatpush1.msra.mxu0 0.0
  %1112 = vmatprep.subr.mxu0 0.0
  %1113 = vmatpush1.msra.mxu0 0.0
  %1114 = vmatprep.subr.mxu0 0.0
  %1115 = vmatpush1.msra.mxu0 0.0
  %1116 = vmatprep.subr.mxu0 0.0
  %1117 = vmatpush1.msra.mxu0 0.0
  %1118 = vmatprep.subr.mxu0 0.0
  %1119 = vmatpush1.msra.mxu0 0.0
  %1120 = vmatprep.subr.mxu0 0.0
  %1121 = vmatpush1.msra.mxu0 0.0
  %1122 = vmatprep.subr.mxu0 0.0
  %1123 = vmatpush1.msra.mxu0 %v1086
  %1124 = vmatprep.subr.mxu0 0.0
  %1125 = vmatpush2.msra.mxu0 0.0
  %1126 = vmatprep.subr.mxu0 0.0
  %1127 = vmatpush2.msra.mxu0 0.0
  %1128 = vmatprep.subr.mxu0 0.0
  %1129 = vmatpush2.msra.mxu0 0.0
  %1130 = vmatprep.subr.mxu0 0.0
  %1131 = vmatpush2.msra.mxu0 0.0
  %1132 = vmatprep.subr.mxu0 0.0
  %1133 = vmatpush2.msra.mxu0 0.0
  %1134 = vmatprep.subr.mxu0 0.0
  %1135 = vmatpush2.msra.mxu0 0.0
  %1136 = vmatprep.subr.mxu0 0.0
  %1137 = vmatpush2.msra.mxu0 0.0
  %1138 = vmatprep.subr.mxu0 0.0
  %1139 = vmatpush2.msra.mxu0 0.0
  %1140 = vmatprep.subr.mxu0 0.0
  %1141 = vmatpush2.msra.mxu0 0.0
  %1142 = vmatprep.subr.mxu0 0.0
  %1143 = vmatpush2.msra.mxu0 0.0
  %1144 = vmatprep.subr.mxu0 0.0
  %1145 = vmatpush2.msra.mxu0 0.0
  %1146 = vmatprep.subr.mxu0 0.0
  %1147 = vmatpush2.msra.mxu0 0.0
  %1148 = vmatprep.subr.mxu0 0.0
  %1149 = vmatpush2.msra.mxu0 0.0
  %1150 = vmatprep.subr.mxu0 0.0
  %1151 = vmatpush2.msra.mxu0 0.0
  %1152 = vmatprep.subr.mxu0 0.0
  %1153 = vmatpush2.msra.mxu0 0.0
  %1154 = vmatprep.subr.mxu0 0.0
  %1155 = vmatpush2.msra.mxu0 0.0
  %1156 = vmatprep.mubr.f32.mxu0 0.0
  %1157 = vmatmul.mubr.f32.gmra.mxu0 %v1090
  %v1158 = vpop.f32.mrf.mxu0
  %v1159 = vadd.f32 %v1087, %v1158
  %v1160 = vpop.f32.mrf.mxu0
  %1161 = vdwg.mxu0
  %v1162 = vmax.f32 %v1159, 0.0
  %v1163 = vld [vmem:[%s3 + $0x108] sm:$0xff]
  %v1164 = vld [vmem:[%s3 + $0x110] sm:$0xff]
  %v1165 = vld [vmem:[%s3 + $0x118] sm:$0xff]
  %v1166 = vld [vmem:[%s3 + $0x120] sm:$0xff]
  %v1167 = vld [vmem:[%s3 + $0x128] sm:$0xff]
  %v1168 = vld [vmem:[%s3 + $0x130] sm:$0xff]
  %v1169 = vld [vmem:[%s3 + $0x138] sm:$0xff]
  %v1170 = vld [vmem:[%s3 + $0x140] sm:$0xff]
  %v1171 = vld [vmem:[%s4 + $0x3] ss:$0 sm:$0xff]
  %vm1172 = vcmask 523264
  %v1174 = vsel %vm1172, %v1162, 0
  %1176 = vmatprep.subr.mxu0 0.0
  %1177 = vmatpush1.msra.mxu0 0.0
  %1178 = vmatprep.subr.mxu0 0.0
  %1179 = vmatpush1.msra.mxu0 0.0
  %1180 = vmatprep.subr.mxu0 0.0
  %1181 = vmatpush1.msra.mxu0 0.0
  %1182 = vmatprep.subr.mxu0 0.0
  %1183 = vmatpush1.msra.mxu0 0.0
  %1184 = vmatprep.subr.mxu0 0.0
  %1185 = vmatpush1.msra.mxu0 0.0
  %1186 = vmatprep.subr.mxu0 0.0
  %1187 = vmatpush1.msra.mxu0 0.0
  %1188 = vmatprep.subr.mxu0 0.0
  %1189 = vmatpush1.msra.mxu0 0.0
  %1190 = vmatprep.subr.mxu0 0.0
  %1191 = vmatpush1.msra.mxu0 0.0
  %1192 = vmatprep.subr.mxu0 0.0
  %1193 = vmatpush1.msra.mxu0 %v1170
  %1194 = vmatprep.subr.mxu0 0.0
  %1195 = vmatpush1.msra.mxu0 %v1169
  %1196 = vmatprep.subr.mxu0 0.0
  %1197 = vmatpush1.msra.mxu0 %v1168
  %1198 = vmatprep.subr.mxu0 0.0
  %1199 = vmatpush1.msra.mxu0 %v1167
  %1200 = vmatprep.subr.mxu0 0.0
  %1201 = vmatpush1.msra.mxu0 %v1166
  %1202 = vmatprep.subr.mxu0 0.0
  %1203 = vmatpush1.msra.mxu0 %v1165
  %1204 = vmatprep.subr.mxu0 0.0
  %1205 = vmatpush1.msra.mxu0 %v1164
  %1206 = vmatprep.subr.mxu0 0.0
  %1207 = vmatpush1.msra.mxu0 %v1163
  %1208 = vmatprep.subr.mxu0 0.0
  %1209 = vmatpush2.msra.mxu0 0.0
  %1210 = vmatprep.subr.mxu0 0.0
  %1211 = vmatpush2.msra.mxu0 0.0
  %1212 = vmatprep.subr.mxu0 0.0
  %1213 = vmatpush2.msra.mxu0 0.0
  %1214 = vmatprep.subr.mxu0 0.0
  %1215 = vmatpush2.msra.mxu0 0.0
  %1216 = vmatprep.subr.mxu0 0.0
  %1217 = vmatpush2.msra.mxu0 0.0
  %1218 = vmatprep.subr.mxu0 0.0
  %1219 = vmatpush2.msra.mxu0 0.0
  %1220 = vmatprep.subr.mxu0 0.0
  %1221 = vmatpush2.msra.mxu0 0.0
  %1222 = vmatprep.subr.mxu0 0.0
  %1223 = vmatpush2.msra.mxu0 0.0
  %1224 = vmatprep.subr.mxu0 0.0
  %1225 = vmatpush2.msra.mxu0 0.0
  %1226 = vmatprep.subr.mxu0 0.0
  %1227 = vmatpush2.msra.mxu0 0.0
  %1228 = vmatprep.subr.mxu0 0.0
  %1229 = vmatpush2.msra.mxu0 0.0
  %1230 = vmatprep.subr.mxu0 0.0
  %1231 = vmatpush2.msra.mxu0 0.0
  %1232 = vmatprep.subr.mxu0 0.0
  %1233 = vmatpush2.msra.mxu0 0.0
  %1234 = vmatprep.subr.mxu0 0.0
  %1235 = vmatpush2.msra.mxu0 0.0
  %1236 = vmatprep.subr.mxu0 0.0
  %1237 = vmatpush2.msra.mxu0 0.0
  %1238 = vmatprep.subr.mxu0 0.0
  %1239 = vmatpush2.msra.mxu0 0.0
  %1240 = vmatprep.mubr.f32.mxu0 0.0
  %1241 = vmatmul.mubr.f32.gmra.mxu0 %v1174
  %v1242 = vpop.f32.mrf.mxu0
  %v1243 = vadd.f32 %v1171, %v1242
  %v1244 = vpop.f32.mrf.mxu0
  %1245 = vdwg.mxu0
  %v1246 = vmax.f32 %v1243, 0.0
  %v1247 = vld [vmem:[%s3 + $0x148] sm:$0xff]
  %v1248 = vld [vmem:[%s3 + $0x150] sm:$0xff]
  %v1249 = vld [vmem:[%s3 + $0x158] sm:$0xff]
  %v1250 = vld [vmem:[%s3 + $0x160] sm:$0xff]
  %v1251 = vld [vmem:[%s3 + $0x168] sm:$0xff]
  %v1252 = vld [vmem:[%s3 + $0x170] sm:$0xff]
  %v1253 = vld [vmem:[%s3 + $0x178] sm:$0xff]
  %v1254 = vld [vmem:[%s3 + $0x180] sm:$0xff]
  %v1255 = vld [vmem:[%s4 + $0x4] ss:$0 sm:$0xff]
  %v1257 = vsel %vm1172, %v1246, 0
  %1259 = vmatprep.subr.mxu0 0.0
  %1260 = vmatpush1.msra.mxu0 0.0
  %1261 = vmatprep.subr.mxu0 0.0
  %1262 = vmatpush1.msra.mxu0 0.0
  %1263 = vmatprep.subr.mxu0 0.0
  %1264 = vmatpush1.msra.mxu0 0.0
  %1265 = vmatprep.subr.mxu0 0.0
  %1266 = vmatpush1.msra.mxu0 0.0
  %1267 = vmatprep.subr.mxu0 0.0
  %1268 = vmatpush1.msra.mxu0 0.0
  %1269 = vmatprep.subr.mxu0 0.0
  %1270 = vmatpush1.msra.mxu0 0.0
  %1271 = vmatprep.subr.mxu0 0.0
  %1272 = vmatpush1.msra.mxu0 0.0
  %1273 = vmatprep.subr.mxu0 0.0
  %1274 = vmatpush1.msra.mxu0 0.0
  %1275 = vmatprep.subr.mxu0 0.0
  %1276 = vmatpush1.msra.mxu0 %v1254
  %1277 = vmatprep.subr.mxu0 0.0
  %1278 = vmatpush1.msra.mxu0 %v1253
  %1279 = vmatprep.subr.mxu0 0.0
  %1280 = vmatpush1.msra.mxu0 %v1252
  %1281 = vmatprep.subr.mxu0 0.0
  %1282 = vmatpush1.msra.mxu0 %v1251
  %1283 = vmatprep.subr.mxu0 0.0
  %1284 = vmatpush1.msra.mxu0 %v1250
  %1285 = vmatprep.subr.mxu0 0.0
  %1286 = vmatpush1.msra.mxu0 %v1249
  %1287 = vmatprep.subr.mxu0 0.0
  %1288 = vmatpush1.msra.mxu0 %v1248
  %1289 = vmatprep.subr.mxu0 0.0
  %1290 = vmatpush1.msra.mxu0 %v1247
  %1291 = vmatprep.subr.mxu0 0.0
  %1292 = vmatpush2.msra.mxu0 0.0
  %1293 = vmatprep.subr.mxu0 0.0
  %1294 = vmatpush2.msra.mxu0 0.0
  %1295 = vmatprep.subr.mxu0 0.0
  %1296 = vmatpush2.msra.mxu0 0.0
  %1297 = vmatprep.subr.mxu0 0.0
  %1298 = vmatpush2.msra.mxu0 0.0
  %1299 = vmatprep.subr.mxu0 0.0
  %1300 = vmatpush2.msra.mxu0 0.0
  %1301 = vmatprep.subr.mxu0 0.0
  %1302 = vmatpush2.msra.mxu0 0.0
  %1303 = vmatprep.subr.mxu0 0.0
  %1304 = vmatpush2.msra.mxu0 0.0
  %1305 = vmatprep.subr.mxu0 0.0
  %1306 = vmatpush2.msra.mxu0 0.0
  %1307 = vmatprep.subr.mxu0 0.0
  %1308 = vmatpush2.msra.mxu0 0.0
  %1309 = vmatprep.subr.mxu0 0.0
  %1310 = vmatpush2.msra.mxu0 0.0
  %1311 = vmatprep.subr.mxu0 0.0
  %1312 = vmatpush2.msra.mxu0 0.0
  %1313 = vmatprep.subr.mxu0 0.0
  %1314 = vmatpush2.msra.mxu0 0.0
  %1315 = vmatprep.subr.mxu0 0.0
  %1316 = vmatpush2.msra.mxu0 0.0
  %1317 = vmatprep.subr.mxu0 0.0
  %1318 = vmatpush2.msra.mxu0 0.0
  %1319 = vmatprep.subr.mxu0 0.0
  %1320 = vmatpush2.msra.mxu0 0.0
  %1321 = vmatprep.subr.mxu0 0.0
  %1322 = vmatpush2.msra.mxu0 0.0
  %1323 = vmatprep.mubr.f32.mxu0 0.0
  %1324 = vmatmul.mubr.f32.gmra.mxu0 %v1257
  %v1325 = vpop.f32.mrf.mxu0
  %v1326 = vadd.f32 %v1255, %v1325
  %v1327 = vpop.f32.mrf.mxu0
  %1328 = vdwg.mxu0
  %v1329 = vmax.f32 %v1326, 0.0
  %v1330 = vld [vmem:[%s3 + $0x188] sm:$0xff]
  %v1331 = vld [vmem:[%s3 + $0x190] sm:$0xff]
  %v1332 = vld [vmem:[%s3 + $0x198] sm:$0xff]
  %v1333 = vld [vmem:[%s3 + $0x1a0] sm:$0xff]
  %v1334 = vld [vmem:[%s3 + $0x1a8] sm:$0xff]
  %v1335 = vld [vmem:[%s3 + $0x1b0] sm:$0xff]
  %v1336 = vld [vmem:[%s3 + $0x1b8] sm:$0xff]
  %v1337 = vld [vmem:[%s3 + $0x1c0] sm:$0xff]
  %v1338 = vld [vmem:[%s4 + $0x5] ss:$0 sm:$0xff]
  %v1340 = vsel %vm1172, %v1329, 0
  %1342 = vmatprep.subr.mxu0 0.0
  %1343 = vmatpush1.msra.mxu0 0.0
  %1344 = vmatprep.subr.mxu0 0.0
  %1345 = vmatpush1.msra.mxu0 0.0
  %1346 = vmatprep.subr.mxu0 0.0
  %1347 = vmatpush1.msra.mxu0 0.0
  %1348 = vmatprep.subr.mxu0 0.0
  %1349 = vmatpush1.msra.mxu0 0.0
  %1350 = vmatprep.subr.mxu0 0.0
  %1351 = vmatpush1.msra.mxu0 0.0
  %1352 = vmatprep.subr.mxu0 0.0
  %1353 = vmatpush1.msra.mxu0 0.0
  %1354 = vmatprep.subr.mxu0 0.0
  %1355 = vmatpush1.msra.mxu0 0.0
  %1356 = vmatprep.subr.mxu0 0.0
  %1357 = vmatpush1.msra.mxu0 0.0
  %1358 = vmatprep.subr.mxu0 0.0
  %1359 = vmatpush1.msra.mxu0 %v1337
  %1360 = vmatprep.subr.mxu0 0.0
  %1361 = vmatpush1.msra.mxu0 %v1336
  %1362 = vmatprep.subr.mxu0 0.0
  %1363 = vmatpush1.msra.mxu0 %v1335
  %1364 = vmatprep.subr.mxu0 0.0
  %1365 = vmatpush1.msra.mxu0 %v1334
  %1366 = vmatprep.subr.mxu0 0.0
  %1367 = vmatpush1.msra.mxu0 %v1333
  %1368 = vmatprep.subr.mxu0 0.0
  %1369 = vmatpush1.msra.mxu0 %v1332
  %1370 = vmatprep.subr.mxu0 0.0
  %1371 = vmatpush1.msra.mxu0 %v1331
  %1372 = vmatprep.subr.mxu0 0.0
  %1373 = vmatpush1.msra.mxu0 %v1330
  %1374 = vmatprep.subr.mxu0 0.0
  %1375 = vmatpush2.msra.mxu0 0.0
  %1376 = vmatprep.subr.mxu0 0.0
  %1377 = vmatpush2.msra.mxu0 0.0
  %1378 = vmatprep.subr.mxu0 0.0
  %1379 = vmatpush2.msra.mxu0 0.0
  %1380 = vmatprep.subr.mxu0 0.0
  %1381 = vmatpush2.msra.mxu0 0.0
  %1382 = vmatprep.subr.mxu0 0.0
  %1383 = vmatpush2.msra.mxu0 0.0
  %1384 = vmatprep.subr.mxu0 0.0
  %1385 = vmatpush2.msra.mxu0 0.0
  %1386 = vmatprep.subr.mxu0 0.0
  %1387 = vmatpush2.msra.mxu0 0.0
  %1388 = vmatprep.subr.mxu0 0.0
  %1389 = vmatpush2.msra.mxu0 0.0
  %1390 = vmatprep.subr.mxu0 0.0
  %1391 = vmatpush2.msra.mxu0 0.0
  %1392 = vmatprep.subr.mxu0 0.0
  %1393 = vmatpush2.msra.mxu0 0.0
  %1394 = vmatprep.subr.mxu0 0.0
  %1395 = vmatpush2.msra.mxu0 0.0
  %1396 = vmatprep.subr.mxu0 0.0
  %1397 = vmatpush2.msra.mxu0 0.0
  %1398 = vmatprep.subr.mxu0 0.0
  %1399 = vmatpush2.msra.mxu0 0.0
  %1400 = vmatprep.subr.mxu0 0.0
  %1401 = vmatpush2.msra.mxu0 0.0
  %1402 = vmatprep.subr.mxu0 0.0
  %1403 = vmatpush2.msra.mxu0 0.0
  %1404 = vmatprep.subr.mxu0 0.0
  %1405 = vmatpush2.msra.mxu0 0.0
  %1406 = vmatprep.mubr.f32.mxu0 0.0
  %1407 = vmatmul.mubr.f32.gmra.mxu0 %v1340
  %v1408 = vpop.f32.mrf.mxu0
  %v1409 = vadd.f32 %v1338, %v1408
  %v1410 = vpop.f32.mrf.mxu0
  %1411 = vdwg.mxu0
  %v1412 = vmax.f32 %v1409, 0.0
  %v1413 = vld [vmem:[%s3 + $0x1c8] sm:$0xff]
  %v1414 = vld [vmem:[%s3 + $0x1d0] sm:$0xff]
  %v1415 = vld [vmem:[%s3 + $0x1d8] sm:$0xff]
  %v1416 = vld [vmem:[%s3 + $0x1e0] sm:$0xff]
  %v1417 = vld [vmem:[%s3 + $0x1e8] sm:$0xff]
  %v1418 = vld [vmem:[%s3 + $0x1f0] sm:$0xff]
  %v1419 = vld [vmem:[%s3 + $0x1f8] sm:$0xff]
  %v1420 = vld [vmem:[%s3 + $0x200] sm:$0xff]
  %v1421 = vld [vmem:[%s4 + $0x6] ss:$0 sm:$0xff]
  %v1423 = vsel %vm1172, %v1412, 0
  %1425 = vmatprep.subr.mxu0 0.0
  %1426 = vmatpush1.msra.mxu0 0.0
  %1427 = vmatprep.subr.mxu0 0.0
  %1428 = vmatpush1.msra.mxu0 0.0
  %1429 = vmatprep.subr.mxu0 0.0
  %1430 = vmatpush1.msra.mxu0 0.0
  %1431 = vmatprep.subr.mxu0 0.0
  %1432 = vmatpush1.msra.mxu0 0.0
  %1433 = vmatprep.subr.mxu0 0.0
  %1434 = vmatpush1.msra.mxu0 0.0
  %1435 = vmatprep.subr.mxu0 0.0
  %1436 = vmatpush1.msra.mxu0 0.0
  %1437 = vmatprep.subr.mxu0 0.0
  %1438 = vmatpush1.msra.mxu0 0.0
  %1439 = vmatprep.subr.mxu0 0.0
  %1440 = vmatpush1.msra.mxu0 0.0
  %1441 = vmatprep.subr.mxu0 0.0
  %1442 = vmatpush1.msra.mxu0 %v1420
  %1443 = vmatprep.subr.mxu0 0.0
  %1444 = vmatpush1.msra.mxu0 %v1419
  %1445 = vmatprep.subr.mxu0 0.0
  %1446 = vmatpush1.msra.mxu0 %v1418
  %1447 = vmatprep.subr.mxu0 0.0
  %1448 = vmatpush1.msra.mxu0 %v1417
  %1449 = vmatprep.subr.mxu0 0.0
  %1450 = vmatpush1.msra.mxu0 %v1416
  %1451 = vmatprep.subr.mxu0 0.0
  %1452 = vmatpush1.msra.mxu0 %v1415
  %1453 = vmatprep.subr.mxu0 0.0
  %1454 = vmatpush1.msra.mxu0 %v1414
  %1455 = vmatprep.subr.mxu0 0.0
  %1456 = vmatpush1.msra.mxu0 %v1413
  %1457 = vmatprep.subr.mxu0 0.0
  %1458 = vmatpush2.msra.mxu0 0.0
  %1459 = vmatprep.subr.mxu0 0.0
  %1460 = vmatpush2.msra.mxu0 0.0
  %1461 = vmatprep.subr.mxu0 0.0
  %1462 = vmatpush2.msra.mxu0 0.0
  %1463 = vmatprep.subr.mxu0 0.0
  %1464 = vmatpush2.msra.mxu0 0.0
  %1465 = vmatprep.subr.mxu0 0.0
  %1466 = vmatpush2.msra.mxu0 0.0
  %1467 = vmatprep.subr.mxu0 0.0
  %1468 = vmatpush2.msra.mxu0 0.0
  %1469 = vmatprep.subr.mxu0 0.0
  %1470 = vmatpush2.msra.mxu0 0.0
  %1471 = vmatprep.subr.mxu0 0.0
  %1472 = vmatpush2.msra.mxu0 0.0
  %1473 = vmatprep.subr.mxu0 0.0
  %1474 = vmatpush2.msra.mxu0 0.0
  %1475 = vmatprep.subr.mxu0 0.0
  %1476 = vmatpush2.msra.mxu0 0.0
  %1477 = vmatprep.subr.mxu0 0.0
  %1478 = vmatpush2.msra.mxu0 0.0
  %1479 = vmatprep.subr.mxu0 0.0
  %1480 = vmatpush2.msra.mxu0 0.0
  %1481 = vmatprep.subr.mxu0 0.0
  %1482 = vmatpush2.msra.mxu0 0.0
  %1483 = vmatprep.subr.mxu0 0.0
  %1484 = vmatpush2.msra.mxu0 0.0
  %1485 = vmatprep.subr.mxu0 0.0
  %1486 = vmatpush2.msra.mxu0 0.0
  %1487 = vmatprep.subr.mxu0 0.0
  %1488 = vmatpush2.msra.mxu0 0.0
  %1489 = vmatprep.mubr.f32.mxu0 0.0
  %1490 = vmatmul.mubr.f32.gmra.mxu0 %v1423
  %v1491 = vpop.f32.mrf.mxu0
  %v1492 = vadd.f32 %v1421, %v1491
  %v1493 = vpop.f32.mrf.mxu0
  %1494 = vdwg.mxu0
  %v1495 = vmax.f32 %v1492, 0.0
  %v1496 = vld [vmem:[%s3 + $0x208] sm:$0xff]
  %v1497 = vld [vmem:[%s3 + $0x210] sm:$0xff]
  %v1498 = vld [vmem:[%s3 + $0x218] sm:$0xff]
  %v1499 = vld [vmem:[%s3 + $0x220] sm:$0xff]
  %v1500 = vld [vmem:[%s3 + $0x228] sm:$0xff]
  %v1501 = vld [vmem:[%s3 + $0x230] sm:$0xff]
  %v1502 = vld [vmem:[%s3 + $0x238] sm:$0xff]
  %v1503 = vld [vmem:[%s3 + $0x240] sm:$0xff]
  %v1504 = vld [vmem:[%s4 + $0x7] ss:$0 sm:$0xff]
  %v1506 = vsel %vm1172, %v1495, 0
  %1508 = vmatprep.subr.mxu0 0.0
  %1509 = vmatpush1.msra.mxu0 0.0
  %1510 = vmatprep.subr.mxu0 0.0
  %1511 = vmatpush1.msra.mxu0 0.0
  %1512 = vmatprep.subr.mxu0 0.0
  %1513 = vmatpush1.msra.mxu0 0.0
  %1514 = vmatprep.subr.mxu0 0.0
  %1515 = vmatpush1.msra.mxu0 0.0
  %1516 = vmatprep.subr.mxu0 0.0
  %1517 = vmatpush1.msra.mxu0 0.0
  %1518 = vmatprep.subr.mxu0 0.0
  %1519 = vmatpush1.msra.mxu0 0.0
  %1520 = vmatprep.subr.mxu0 0.0
  %1521 = vmatpush1.msra.mxu0 0.0
  %1522 = vmatprep.subr.mxu0 0.0
  %1523 = vmatpush1.msra.mxu0 0.0
  %1524 = vmatprep.subr.mxu0 0.0
  %1525 = vmatpush1.msra.mxu0 %v1503
  %1526 = vmatprep.subr.mxu0 0.0
  %1527 = vmatpush1.msra.mxu0 %v1502
  %1528 = vmatprep.subr.mxu0 0.0
  %1529 = vmatpush1.msra.mxu0 %v1501
  %1530 = vmatprep.subr.mxu0 0.0
  %1531 = vmatpush1.msra.mxu0 %v1500
  %1532 = vmatprep.subr.mxu0 0.0
  %1533 = vmatpush1.msra.mxu0 %v1499
  %1534 = vmatprep.subr.mxu0 0.0
  %1535 = vmatpush1.msra.mxu0 %v1498
  %1536 = vmatprep.subr.mxu0 0.0
  %1537 = vmatpush1.msra.mxu0 %v1497
  %1538 = vmatprep.subr.mxu0 0.0
  %1539 = vmatpush1.msra.mxu0 %v1496
  %1540 = vmatprep.subr.mxu0 0.0
  %1541 = vmatpush2.msra.mxu0 0.0
  %1542 = vmatprep.subr.mxu0 0.0
  %1543 = vmatpush2.msra.mxu0 0.0
  %1544 = vmatprep.subr.mxu0 0.0
  %1545 = vmatpush2.msra.mxu0 0.0
  %1546 = vmatprep.subr.mxu0 0.0
  %1547 = vmatpush2.msra.mxu0 0.0
  %1548 = vmatprep.subr.mxu0 0.0
  %1549 = vmatpush2.msra.mxu0 0.0
  %1550 = vmatprep.subr.mxu0 0.0
  %1551 = vmatpush2.msra.mxu0 0.0
  %1552 = vmatprep.subr.mxu0 0.0
  %1553 = vmatpush2.msra.mxu0 0.0
  %1554 = vmatprep.subr.mxu0 0.0
  %1555 = vmatpush2.msra.mxu0 0.0
  %1556 = vmatprep.subr.mxu0 0.0
  %1557 = vmatpush2.msra.mxu0 0.0
  %1558 = vmatprep.subr.mxu0 0.0
  %1559 = vmatpush2.msra.mxu0 0.0
  %1560 = vmatprep.subr.mxu0 0.0
  %1561 = vmatpush2.msra.mxu0 0.0
  %1562 = vmatprep.subr.mxu0 0.0
  %1563 = vmatpush2.msra.mxu0 0.0
  %1564 = vmatprep.subr.mxu0 0.0
  %1565 = vmatpush2.msra.mxu0 0.0
  %1566 = vmatprep.subr.mxu0 0.0
  %1567 = vmatpush2.msra.mxu0 0.0
  %1568 = vmatprep.subr.mxu0 0.0
  %1569 = vmatpush2.msra.mxu0 0.0
  %1570 = vmatprep.subr.mxu0 0.0
  %1571 = vmatpush2.msra.mxu0 0.0
  %1572 = vmatprep.mubr.f32.mxu0 0.0
  %1573 = vmatmul.mubr.f32.gmra.mxu0 %v1506
  %v1574 = vpop.f32.mrf.mxu0
  %v1575 = vadd.f32 %v1504, %v1574
  %v1576 = vpop.f32.mrf.mxu0
  %1577 = vdwg.mxu0
  %v1578 = vmax.f32 %v1575, 0.0
  %v1579 = vld [vmem:[%s3 + $0x248] sm:$0xff]
  %v1580 = vld [vmem:[%s3 + $0x250] sm:$0xff]
  %v1581 = vld [vmem:[%s3 + $0x258] sm:$0xff]
  %v1582 = vld [vmem:[%s3 + $0x260] sm:$0xff]
  %v1583 = vld [vmem:[%s3 + $0x268] sm:$0xff]
  %v1584 = vld [vmem:[%s3 + $0x270] sm:$0xff]
  %v1585 = vld [vmem:[%s3 + $0x278] sm:$0xff]
  %v1586 = vld [vmem:[%s3 + $0x280] sm:$0xff]
  %v1587 = vld [vmem:[%s4 + $0x10] ss:$0 sm:$0xff]
  %v1589 = vsel %vm1172, %v1578, 0
  %1591 = vmatprep.subr.mxu0 0.0
  %1592 = vmatpush1.msra.mxu0 0.0
  %1593 = vmatprep.subr.mxu0 0.0
  %1594 = vmatpush1.msra.mxu0 0.0
  %1595 = vmatprep.subr.mxu0 0.0
  %1596 = vmatpush1.msra.mxu0 0.0
  %1597 = vmatprep.subr.mxu0 0.0
  %1598 = vmatpush1.msra.mxu0 0.0
  %1599 = vmatprep.subr.mxu0 0.0
  %1600 = vmatpush1.msra.mxu0 0.0
  %1601 = vmatprep.subr.mxu0 0.0
  %1602 = vmatpush1.msra.mxu0 0.0
  %1603 = vmatprep.subr.mxu0 0.0
  %1604 = vmatpush1.msra.mxu0 0.0
  %1605 = vmatprep.subr.mxu0 0.0
  %1606 = vmatpush1.msra.mxu0 0.0
  %1607 = vmatprep.subr.mxu0 0.0
  %1608 = vmatpush1.msra.mxu0 %v1586
  %1609 = vmatprep.subr.mxu0 0.0
  %1610 = vmatpush1.msra.mxu0 %v1585
  %1611 = vmatprep.subr.mxu0 0.0
  %1612 = vmatpush1.msra.mxu0 %v1584
  %1613 = vmatprep.subr.mxu0 0.0
  %1614 = vmatpush1.msra.mxu0 %v1583
  %1615 = vmatprep.subr.mxu0 0.0
  %1616 = vmatpush1.msra.mxu0 %v1582
  %1617 = vmatprep.subr.mxu0 0.0
  %1618 = vmatpush1.msra.mxu0 %v1581
  %1619 = vmatprep.subr.mxu0 0.0
  %1620 = vmatpush1.msra.mxu0 %v1580
  %1621 = vmatprep.subr.mxu0 0.0
  %1622 = vmatpush1.msra.mxu0 %v1579
  %1623 = vmatprep.subr.mxu0 0.0
  %1624 = vmatpush2.msra.mxu0 0.0
  %1625 = vmatprep.subr.mxu0 0.0
  %1626 = vmatpush2.msra.mxu0 0.0
  %1627 = vmatprep.subr.mxu0 0.0
  %1628 = vmatpush2.msra.mxu0 0.0
  %1629 = vmatprep.subr.mxu0 0.0
  %1630 = vmatpush2.msra.mxu0 0.0
  %1631 = vmatprep.subr.mxu0 0.0
  %1632 = vmatpush2.msra.mxu0 0.0
  %1633 = vmatprep.subr.mxu0 0.0
  %1634 = vmatpush2.msra.mxu0 0.0
  %1635 = vmatprep.subr.mxu0 0.0
  %1636 = vmatpush2.msra.mxu0 0.0
  %1637 = vmatprep.subr.mxu0 0.0
  %1638 = vmatpush2.msra.mxu0 0.0
  %1639 = vmatprep.subr.mxu0 0.0
  %1640 = vmatpush2.msra.mxu0 0.0
  %1641 = vmatprep.subr.mxu0 0.0
  %1642 = vmatpush2.msra.mxu0 0.0
  %1643 = vmatprep.subr.mxu0 0.0
  %1644 = vmatpush2.msra.mxu0 0.0
  %1645 = vmatprep.subr.mxu0 0.0
  %1646 = vmatpush2.msra.mxu0 0.0
  %1647 = vmatprep.subr.mxu0 0.0
  %1648 = vmatpush2.msra.mxu0 0.0
  %1649 = vmatprep.subr.mxu0 0.0
  %1650 = vmatpush2.msra.mxu0 0.0
  %1651 = vmatprep.subr.mxu0 0.0
  %1652 = vmatpush2.msra.mxu0 0.0
  %1653 = vmatprep.subr.mxu0 0.0
  %1654 = vmatpush2.msra.mxu0 0.0
  %1655 = vmatprep.mubr.f32.mxu0 0.0
  %1656 = vmatmul.mubr.f32.gmra.mxu0 %v1589
  %v1657 = vpop.f32.mrf.mxu0
  %v1658 = vadd.f32 %v1587, %v1657
  %v1659 = vpop.f32.mrf.mxu0
  %1660 = vdwg.mxu0
  %v1661 = vmax.f32 %v1658, 0.0
  %v1662 = vld [vmem:[%s3 + $0x288] sm:$0xff]
  %v1663 = vld [vmem:[%s3 + $0x290] sm:$0xff]
  %v1664 = vld [vmem:[%s3 + $0x298] sm:$0xff]
  %v1665 = vld [vmem:[%s3 + $0x2a0] sm:$0xff]
  %v1666 = vld [vmem:[%s3 + $0x2a8] sm:$0xff]
  %v1667 = vld [vmem:[%s3 + $0x2b0] sm:$0xff]
  %v1668 = vld [vmem:[%s3 + $0x2b8] sm:$0xff]
  %v1669 = vld [vmem:[%s3 + $0x2c0] sm:$0xff]
  %v1670 = vld [vmem:[%s4 + $0x11] ss:$0 sm:$0xff]
  %v1672 = vsel %vm1172, %v1661, 0
  %1674 = vmatprep.subr.mxu0 0.0
  %1675 = vmatpush1.msra.mxu0 0.0
  %1676 = vmatprep.subr.mxu0 0.0
  %1677 = vmatpush1.msra.mxu0 0.0
  %1678 = vmatprep.subr.mxu0 0.0
  %1679 = vmatpush1.msra.mxu0 0.0
  %1680 = vmatprep.subr.mxu0 0.0
  %1681 = vmatpush1.msra.mxu0 0.0
  %1682 = vmatprep.subr.mxu0 0.0
  %1683 = vmatpush1.msra.mxu0 0.0
  %1684 = vmatprep.subr.mxu0 0.0
  %1685 = vmatpush1.msra.mxu0 0.0
  %1686 = vmatprep.subr.mxu0 0.0
  %1687 = vmatpush1.msra.mxu0 0.0
  %1688 = vmatprep.subr.mxu0 0.0
  %1689 = vmatpush1.msra.mxu0 0.0
  %1690 = vmatprep.subr.mxu0 0.0
  %1691 = vmatpush1.msra.mxu0 %v1669
  %1692 = vmatprep.subr.mxu0 0.0
  %1693 = vmatpush1.msra.mxu0 %v1668
  %1694 = vmatprep.subr.mxu0 0.0
  %1695 = vmatpush1.msra.mxu0 %v1667
  %1696 = vmatprep.subr.mxu0 0.0
  %1697 = vmatpush1.msra.mxu0 %v1666
  %1698 = vmatprep.subr.mxu0 0.0
  %1699 = vmatpush1.msra.mxu0 %v1665
  %1700 = vmatprep.subr.mxu0 0.0
  %1701 = vmatpush1.msra.mxu0 %v1664
  %1702 = vmatprep.subr.mxu0 0.0
  %1703 = vmatpush1.msra.mxu0 %v1663
  %1704 = vmatprep.subr.mxu0 0.0
  %1705 = vmatpush1.msra.mxu0 %v1662
  %1706 = vmatprep.subr.mxu0 0.0
  %1707 = vmatpush2.msra.mxu0 0.0
  %1708 = vmatprep.subr.mxu0 0.0
  %1709 = vmatpush2.msra.mxu0 0.0
  %1710 = vmatprep.subr.mxu0 0.0
  %1711 = vmatpush2.msra.mxu0 0.0
  %1712 = vmatprep.subr.mxu0 0.0
  %1713 = vmatpush2.msra.mxu0 0.0
  %1714 = vmatprep.subr.mxu0 0.0
  %1715 = vmatpush2.msra.mxu0 0.0
  %1716 = vmatprep.subr.mxu0 0.0
  %1717 = vmatpush2.msra.mxu0 0.0
  %1718 = vmatprep.subr.mxu0 0.0
  %1719 = vmatpush2.msra.mxu0 0.0
  %1720 = vmatprep.subr.mxu0 0.0
  %1721 = vmatpush2.msra.mxu0 0.0
  %1722 = vmatprep.subr.mxu0 0.0
  %1723 = vmatpush2.msra.mxu0 0.0
  %1724 = vmatprep.subr.mxu0 0.0
  %1725 = vmatpush2.msra.mxu0 0.0
  %1726 = vmatprep.subr.mxu0 0.0
  %1727 = vmatpush2.msra.mxu0 0.0
  %1728 = vmatprep.subr.mxu0 0.0
  %1729 = vmatpush2.msra.mxu0 0.0
  %1730 = vmatprep.subr.mxu0 0.0
  %1731 = vmatpush2.msra.mxu0 0.0
  %1732 = vmatprep.subr.mxu0 0.0
  %1733 = vmatpush2.msra.mxu0 0.0
  %1734 = vmatprep.subr.mxu0 0.0
  %1735 = vmatpush2.msra.mxu0 0.0
  %1736 = vmatprep.subr.mxu0 0.0
  %1737 = vmatpush2.msra.mxu0 0.0
  %1738 = vmatprep.mubr.f32.mxu0 0.0
  %1739 = vmatmul.mubr.f32.gmra.mxu0 %v1672
  %v1740 = vpop.f32.mrf.mxu0
  %v1741 = vadd.f32 %v1670, %v1740
  %v1742 = vpop.f32.mrf.mxu0
  %1743 = vdwg.mxu0
  %v1744 = vld [vmem:[%s3 + $0x2c8] sm:$0xff]
  %v1745 = vld [vmem:[%s3 + $0x2d0] sm:$0xff]
  %v1746 = vld [vmem:[%s3 + $0x2d8] sm:$0xff]
  %v1747 = vld [vmem:[%s3 + $0x2e0] sm:$0xff]
  %vm1748 = vcmask 130048
  %v1750 = vsel %vm1748, %v1741, 0
  %1752 = vmatprep.subr.mxu0 0.0
  %1753 = vmatpush1.msra.mxu0 0.0
  %1754 = vmatprep.subr.mxu0 0.0
  %1755 = vmatpush1.msra.mxu0 0.0
  %1756 = vmatprep.subr.mxu0 0.0
  %1757 = vmatpush1.msra.mxu0 0.0
  %1758 = vmatprep.subr.mxu0 0.0
  %1759 = vmatpush1.msra.mxu0 0.0
  %1760 = vmatprep.subr.mxu0 0.0
  %1761 = vmatpush1.msra.mxu0 0.0
  %1762 = vmatprep.subr.mxu0 0.0
  %1763 = vmatpush1.msra.mxu0 0.0
  %1764 = vmatprep.subr.mxu0 0.0
  %1765 = vmatpush1.msra.mxu0 0.0
  %1766 = vmatprep.subr.mxu0 0.0
  %1767 = vmatpush1.msra.mxu0 0.0
  %1768 = vmatprep.subr.mxu0 0.0
  %1769 = vmatpush1.msra.mxu0 0.0
  %1770 = vmatprep.subr.mxu0 0.0
  %1771 = vmatpush1.msra.mxu0 0.0
  %1772 = vmatprep.subr.mxu0 0.0
  %1773 = vmatpush1.msra.mxu0 0.0
  %1774 = vmatprep.subr.mxu0 0.0
  %1775 = vmatpush1.msra.mxu0 0.0
  %1776 = vmatprep.subr.mxu0 0.0
  %1777 = vmatpush1.msra.mxu0 0.0
  %1778 = vmatprep.subr.mxu0 0.0
  %1779 = vmatpush1.msra.mxu0 0.0
  %1780 = vmatprep.subr.mxu0 0.0
  %1781 = vmatpush1.msra.mxu0 %v1747
  %1782 = vmatprep.subr.mxu0 0.0
  %1783 = vmatpush1.msra.mxu0 %v1746
  %1784 = vmatprep.subr.mxu0 0.0
  %1785 = vmatpush2.msra.mxu0 0.0
  %1786 = vmatprep.subr.mxu0 0.0
  %1787 = vmatpush2.msra.mxu0 0.0
  %1788 = vmatprep.subr.mxu0 0.0
  %1789 = vmatpush2.msra.mxu0 0.0
  %1790 = vmatprep.subr.mxu0 0.0
  %1791 = vmatpush2.msra.mxu0 0.0
  %1792 = vmatprep.subr.mxu0 0.0
  %1793 = vmatpush2.msra.mxu0 0.0
  %1794 = vmatprep.subr.mxu0 0.0
  %1795 = vmatpush2.msra.mxu0 0.0
  %1796 = vmatprep.subr.mxu0 0.0
  %1797 = vmatpush2.msra.mxu0 0.0
  %1798 = vmatprep.subr.mxu0 0.0
  %1799 = vmatpush2.msra.mxu0 0.0
  %1800 = vmatprep.subr.mxu0 0.0
  %1801 = vmatpush2.msra.mxu0 0.0
  %1802 = vmatprep.subr.mxu0 0.0
  %1803 = vmatpush2.msra.mxu0 0.0
  %1804 = vmatprep.subr.mxu0 0.0
  %1805 = vmatpush2.msra.mxu0 0.0
  %1806 = vmatprep.subr.mxu0 0.0
  %1807 = vmatpush2.msra.mxu0 0.0
  %1808 = vmatprep.subr.mxu0 0.0
  %1809 = vmatpush2.msra.mxu0 0.0
  %1810 = vmatprep.subr.mxu0 0.0
  %1811 = vmatpush2.msra.mxu0 0.0
  %1812 = vmatprep.subr.mxu0 0.0
  %1813 = vmatpush2.msra.mxu0 0.0
  %1814 = vmatprep.subr.mxu0 0.0
  %1815 = vmatpush2.msra.mxu0 0.0
  %1816 = vmatprep.mubr.f32.mxu0 0.0
  %1817 = vmatmul.mubr.f32.gmra.mxu0 %v1750
  %v1818 = vpop.f32.mrf.mxu0
  %v1819 = vadd.f32 0.0, %v1818
  %v1820 = vpop.f32.mrf.mxu0
  %1821 = vdwg.mxu0
  %v1823 = vsel %vm1748, %v1083, 0
  %1825 = vmatprep.subr.mxu0 0.0
  %1826 = vmatpush1.msra.mxu0 0.0
  %1827 = vmatprep.subr.mxu0 0.0
  %1828 = vmatpush1.msra.mxu0 0.0
  %1829 = vmatprep.subr.mxu0 0.0
  %1830 = vmatpush1.msra.mxu0 0.0
  %1831 = vmatprep.subr.mxu0 0.0
  %1832 = vmatpush1.msra.mxu0 0.0
  %1833 = vmatprep.subr.mxu0 0.0
  %1834 = vmatpush1.msra.mxu0 0.0
  %1835 = vmatprep.subr.mxu0 0.0
  %1836 = vmatpush1.msra.mxu0 0.0
  %1837 = vmatprep.subr.mxu0 0.0
  %1838 = vmatpush1.msra.mxu0 0.0
  %1839 = vmatprep.subr.mxu0 0.0
  %1840 = vmatpush1.msra.mxu0 0.0
  %1841 = vmatprep.subr.mxu0 0.0
  %1842 = vmatpush1.msra.mxu0 0.0
  %1843 = vmatprep.subr.mxu0 0.0
  %1844 = vmatpush1.msra.mxu0 0.0
  %1845 = vmatprep.subr.mxu0 0.0
  %1846 = vmatpush1.msra.mxu0 0.0
  %1847 = vmatprep.subr.mxu0 0.0
  %1848 = vmatpush1.msra.mxu0 0.0
  %1849 = vmatprep.subr.mxu0 0.0
  %1850 = vmatpush1.msra.mxu0 0.0
  %1851 = vmatprep.subr.mxu0 0.0
  %1852 = vmatpush1.msra.mxu0 0.0
  %1853 = vmatprep.subr.mxu0 0.0
  %1854 = vmatpush1.msra.mxu0 %v1745
  %1855 = vmatprep.subr.mxu0 0.0
  %1856 = vmatpush1.msra.mxu0 %v1744
  %1857 = vmatprep.subr.mxu0 0.0
  %1858 = vmatpush2.msra.mxu0 0.0
  %1859 = vmatprep.subr.mxu0 0.0
  %1860 = vmatpush2.msra.mxu0 0.0
  %1861 = vmatprep.subr.mxu0 0.0
  %1862 = vmatpush2.msra.mxu0 0.0
  %1863 = vmatprep.subr.mxu0 0.0
  %1864 = vmatpush2.msra.mxu0 0.0
  %1865 = vmatprep.subr.mxu0 0.0
  %1866 = vmatpush2.msra.mxu0 0.0
  %1867 = vmatprep.subr.mxu0 0.0
  %1868 = vmatpush2.msra.mxu0 0.0
  %1869 = vmatprep.subr.mxu0 0.0
  %1870 = vmatpush2.msra.mxu0 0.0
  %1871 = vmatprep.subr.mxu0 0.0
  %1872 = vmatpush2.msra.mxu0 0.0
  %1873 = vmatprep.subr.mxu0 0.0
  %1874 = vmatpush2.msra.mxu0 0.0
  %1875 = vmatprep.subr.mxu0 0.0
  %1876 = vmatpush2.msra.mxu0 0.0
  %1877 = vmatprep.subr.mxu0 0.0
  %1878 = vmatpush2.msra.mxu0 0.0
  %1879 = vmatprep.subr.mxu0 0.0
  %1880 = vmatpush2.msra.mxu0 0.0
  %1881 = vmatprep.subr.mxu0 0.0
  %1882 = vmatpush2.msra.mxu0 0.0
  %1883 = vmatprep.subr.mxu0 0.0
  %1884 = vmatpush2.msra.mxu0 0.0
  %1885 = vmatprep.subr.mxu0 0.0
  %1886 = vmatpush2.msra.mxu0 0.0
  %1887 = vmatprep.subr.mxu0 0.0
  %1888 = vmatpush2.msra.mxu0 0.0
  %1889 = vmatprep.mubr.f32.mxu0 0.0
  %1890 = vmatmul.mubr.f32.gmra.mxu0 %v1823
  %v1891 = vpop.f32.mrf.mxu0
  %v1892 = vadd.f32 %v1819, %v1891
  %v1893 = vpop.f32.mrf.mxu0
  %1894 = vdwg.mxu0
  %v1895 = vld [vmem:[%s4 + $0x12] ss:$0 sm:$0xff]
  %v1896 = vadd.f32 %v1892, %v1895
  %v1897 = vlaneseq
  %v1898 = vshrl.u32 %v1897, 7
  %vm1899 = vcmp.lt.s32.totalorder %v1898, 2
  %v1900 = vsel %vm1899, 1, 0
  %v1901 = vcvt.s32.f32 %v1900
  %v1902 = vmul.f32 %v1896, %v1901
  %vm1903 = vcmask 261120
  %v1904 = vsel %vm1903, %v1902, 0.0
  %v1905 = vrot.slane %v1904, 4
  %v1906 = vadd.f32 %v1904, %v1905
  %v1907 = vrot.slane %v1906, 2
  %v1908 = vadd.f32 %v1906, %v1907
  %v1909 = vrot.slane %v1908, 1
  %v1910 = vadd.f32 %v1908, %v1909
  %v1911 = vmul.f32 %v1902, %v1896
  %v1912 = vsel %vm1903, %v1911, 0.0
  %v1913 = vrot.slane %v1912, 4
  %v1914 = vadd.f32 %v1912, %v1913
  %v1915 = vrot.slane %v1914, 2
  %v1916 = vadd.f32 %v1914, %v1915
  %v1917 = vrot.slane %v1916, 1
  %v1918 = vadd.f32 %v1916, %v1917
  %v1919 = vmul.f32 %v1910, 0.5
  %v1920 = vmul.f32 %v1918, 0.5
  %v1921 = vmul.f32 %v1919, %v1919
  %v1922 = vsub.f32 %v1920, %v1921
  %v1923 = vsub.f32 %v1896, %v1919
  %v1924 = vadd.f32 %v1922, 1e-05
  %v1925 = vrsqrt.pop %v1924
  %v1926 = vmul.f32 %v1923, %v1925
  %v1927 = vld [vmem:[%s4 + $0x13] ss:$0 sm:$0xff]
  %v1928 = vmul.f32 %v1926, %v1927
  %v1929 = vld [vmem:[%s4 + $0x14] ss:$0 sm:$0xff]
  %v1930 = vadd.f32 %v1928, %v1929
  %v1931 = vmax.f32 %v1930, 0.0
  %v1932 = vld [vmem:[%s3 + $0x2e8] sm:$0xff]
  %v1933 = vld [vmem:[%s3 + $0x2f0] sm:$0xff]
  %v1934 = vld [vmem:[%s3 + $0x2f8] sm:$0xff]
  %v1935 = vld [vmem:[%s3 + $0x300] sm:$0xff]
  %v1936 = vld [vmem:[%s4 + $0x15] ss:$0 sm:$0xff]
  %v1938 = vsel %vm1903, %v1931, 0
  %1940 = vmatprep.subr.mxu0 0.0
  %1941 = vmatpush1.msra.mxu0 0.0
  %1942 = vmatprep.subr.mxu0 0.0
  %1943 = vmatpush1.msra.mxu0 0.0
  %1944 = vmatprep.subr.mxu0 0.0
  %1945 = vmatpush1.msra.mxu0 0.0
  %1946 = vmatprep.subr.mxu0 0.0
  %1947 = vmatpush1.msra.mxu0 0.0
  %1948 = vmatprep.subr.mxu0 0.0
  %1949 = vmatpush1.msra.mxu0 0.0
  %1950 = vmatprep.subr.mxu0 0.0
  %1951 = vmatpush1.msra.mxu0 0.0
  %1952 = vmatprep.subr.mxu0 0.0
  %1953 = vmatpush1.msra.mxu0 0.0
  %1954 = vmatprep.subr.mxu0 0.0
  %1955 = vmatpush1.msra.mxu0 0.0
  %1956 = vmatprep.subr.mxu0 0.0
  %1957 = vmatpush1.msra.mxu0 0.0
  %1958 = vmatprep.subr.mxu0 0.0
  %1959 = vmatpush1.msra.mxu0 0.0
  %1960 = vmatprep.subr.mxu0 0.0
  %1961 = vmatpush1.msra.mxu0 0.0
  %1962 = vmatprep.subr.mxu0 0.0
  %1963 = vmatpush1.msra.mxu0 0.0
  %1964 = vmatprep.subr.mxu0 0.0
  %1965 = vmatpush1.msra.mxu0 %v1935
  %1966 = vmatprep.subr.mxu0 0.0
  %1967 = vmatpush1.msra.mxu0 %v1934
  %1968 = vmatprep.subr.mxu0 0.0
  %1969 = vmatpush1.msra.mxu0 %v1933
  %1970 = vmatprep.subr.mxu0 0.0
  %1971 = vmatpush1.msra.mxu0 %v1932
  %1972 = vmatprep.subr.mxu0 0.0
  %1973 = vmatpush2.msra.mxu0 0.0
  %1974 = vmatprep.subr.mxu0 0.0
  %1975 = vmatpush2.msra.mxu0 0.0
  %1976 = vmatprep.subr.mxu0 0.0
  %1977 = vmatpush2.msra.mxu0 0.0
  %1978 = vmatprep.subr.mxu0 0.0
  %1979 = vmatpush2.msra.mxu0 0.0
  %1980 = vmatprep.subr.mxu0 0.0
  %1981 = vmatpush2.msra.mxu0 0.0
  %1982 = vmatprep.subr.mxu0 0.0
  %1983 = vmatpush2.msra.mxu0 0.0
  %1984 = vmatprep.subr.mxu0 0.0
  %1985 = vmatpush2.msra.mxu0 0.0
  %1986 = vmatprep.subr.mxu0 0.0
  %1987 = vmatpush2.msra.mxu0 0.0
  %1988 = vmatprep.subr.mxu0 0.0
  %1989 = vmatpush2.msra.mxu0 0.0
  %1990 = vmatprep.subr.mxu0 0.0
  %1991 = vmatpush2.msra.mxu0 0.0
  %1992 = vmatprep.subr.mxu0 0.0
  %1993 = vmatpush2.msra.mxu0 0.0
  %1994 = vmatprep.subr.mxu0 0.0
  %1995 = vmatpush2.msra.mxu0 0.0
  %1996 = vmatprep.subr.mxu0 0.0
  %1997 = vmatpush2.msra.mxu0 0.0
  %1998 = vmatprep.subr.mxu0 0.0
  %1999 = vmatpush2.msra.mxu0 0.0
  %2000 = vmatprep.subr.mxu0 0.0
  %2001 = vmatpush2.msra.mxu0 0.0
  %2002 = vmatprep.subr.mxu0 0.0
  %2003 = vmatpush2.msra.mxu0 0.0
  %2004 = vmatprep.mubr.f32.mxu0 0.0
  %2005 = vmatmul.mubr.f32.gmra.mxu0 %v1938
  %v2006 = vpop.f32.mrf.mxu0
  %v2007 = vadd.f32 %v1936, %v2006
  %v2008 = vpop.f32.mrf.mxu0
  %2009 = vdwg.mxu0
  %v2010 = vmax.f32 %v2007, 0.0
  %v2011 = vld [vmem:[%s3 + $0x308] sm:$0xff]
  %v2012 = vld [vmem:[%s3 + $0x310] sm:$0xff]
  %v2013 = vld [vmem:[%s3 + $0x318] sm:$0xff]
  %v2014 = vld [vmem:[%s3 + $0x320] sm:$0xff]
  %v2015 = vld [vmem:[%s4 + $0x16] ss:$0 sm:$0xff]
  %v2017 = vsel %vm1903, %v2010, 0
  %2019 = vmatprep.subr.mxu0 0.0
  %2020 = vmatpush1.msra.mxu0 0.0
  %2021 = vmatprep.subr.mxu0 0.0
  %2022 = vmatpush1.msra.mxu0 0.0
  %2023 = vmatprep.subr.mxu0 0.0
  %2024 = vmatpush1.msra.mxu0 0.0
  %2025 = vmatprep.subr.mxu0 0.0
  %2026 = vmatpush1.msra.mxu0 0.0
  %2027 = vmatprep.subr.mxu0 0.0
  %2028 = vmatpush1.msra.mxu0 0.0
  %2029 = vmatprep.subr.mxu0 0.0
  %2030 = vmatpush1.msra.mxu0 0.0
  %2031 = vmatprep.subr.mxu0 0.0
  %2032 = vmatpush1.msra.mxu0 0.0
  %2033 = vmatprep.subr.mxu0 0.0
  %2034 = vmatpush1.msra.mxu0 0.0
  %2035 = vmatprep.subr.mxu0 0.0
  %2036 = vmatpush1.msra.mxu0 0.0
  %2037 = vmatprep.subr.mxu0 0.0
  %2038 = vmatpush1.msra.mxu0 0.0
  %2039 = vmatprep.subr.mxu0 0.0
  %2040 = vmatpush1.msra.mxu0 0.0
  %2041 = vmatprep.subr.mxu0 0.0
  %2042 = vmatpush1.msra.mxu0 0.0
  %2043 = vmatprep.subr.mxu0 0.0
  %2044 = vmatpush1.msra.mxu0 %v2014
  %2045 = vmatprep.subr.mxu0 0.0
  %2046 = vmatpush1.msra.mxu0 %v2013
  %2047 = vmatprep.subr.mxu0 0.0
  %2048 = vmatpush1.msra.mxu0 %v2012
  %2049 = vmatprep.subr.mxu0 0.0
  %2050 = vmatpush1.msra.mxu0 %v2011
  %2051 = vmatprep.subr.mxu0 0.0
  %2052 = vmatpush2.msra.mxu0 0.0
  %2053 = vmatprep.subr.mxu0 0.0
  %2054 = vmatpush2.msra.mxu0 0.0
  %2055 = vmatprep.subr.mxu0 0.0
  %2056 = vmatpush2.msra.mxu0 0.0
  %2057 = vmatprep.subr.mxu0 0.0
  %2058 = vmatpush2.msra.mxu0 0.0
  %2059 = vmatprep.subr.mxu0 0.0
  %2060 = vmatpush2.msra.mxu0 0.0
  %2061 = vmatprep.subr.mxu0 0.0
  %2062 = vmatpush2.msra.mxu0 0.0
  %2063 = vmatprep.subr.mxu0 0.0
  %2064 = vmatpush2.msra.mxu0 0.0
  %2065 = vmatprep.subr.mxu0 0.0
  %2066 = vmatpush2.msra.mxu0 0.0
  %2067 = vmatprep.subr.mxu0 0.0
  %2068 = vmatpush2.msra.mxu0 0.0
  %2069 = vmatprep.subr.mxu0 0.0
  %2070 = vmatpush2.msra.mxu0 0.0
  %2071 = vmatprep.subr.mxu0 0.0
  %2072 = vmatpush2.msra.mxu0 0.0
  %2073 = vmatprep.subr.mxu0 0.0
  %2074 = vmatpush2.msra.mxu0 0.0
  %2075 = vmatprep.subr.mxu0 0.0
  %2076 = vmatpush2.msra.mxu0 0.0
  %2077 = vmatprep.subr.mxu0 0.0
  %2078 = vmatpush2.msra.mxu0 0.0
  %2079 = vmatprep.subr.mxu0 0.0
  %2080 = vmatpush2.msra.mxu0 0.0
  %2081 = vmatprep.subr.mxu0 0.0
  %2082 = vmatpush2.msra.mxu0 0.0
  %2083 = vmatprep.mubr.f32.mxu0 0.0
  %2084 = vmatmul.mubr.f32.gmra.mxu0 %v2017
  %v2085 = vpop.f32.mrf.mxu0
  %v2086 = vadd.f32 %v2015, %v2085
  %v2087 = vpop.f32.mrf.mxu0
  %2088 = vdwg.mxu0
  %v2089 = vmax.f32 %v2086, 0.0
  %v2090 = vld [vmem:[%s3 + $0x328] sm:$0xff]
  %v2091 = vld [vmem:[%s3 + $0x330] sm:$0xff]
  %v2092 = vld [vmem:[%s4 + $0x17] ss:$0 sm:$0xff]
  %v2094 = vsel %vm1748, %v2089, 0
  %2096 = vmatprep.subr.mxu0 0.0
  %2097 = vmatpush1.msra.mxu0 0.0
  %2098 = vmatprep.subr.mxu0 0.0
  %2099 = vmatpush1.msra.mxu0 0.0
  %2100 = vmatprep.subr.mxu0 0.0
  %2101 = vmatpush1.msra.mxu0 0.0
  %2102 = vmatprep.subr.mxu0 0.0
  %2103 = vmatpush1.msra.mxu0 0.0
  %2104 = vmatprep.subr.mxu0 0.0
  %2105 = vmatpush1.msra.mxu0 0.0
  %2106 = vmatprep.subr.mxu0 0.0
  %2107 = vmatpush1.msra.mxu0 0.0
  %2108 = vmatprep.subr.mxu0 0.0
  %2109 = vmatpush1.msra.mxu0 0.0
  %2110 = vmatprep.subr.mxu0 0.0
  %2111 = vmatpush1.msra.mxu0 0.0
  %2112 = vmatprep.subr.mxu0 0.0
  %2113 = vmatpush1.msra.mxu0 0.0
  %2114 = vmatprep.subr.mxu0 0.0
  %2115 = vmatpush1.msra.mxu0 0.0
  %2116 = vmatprep.subr.mxu0 0.0
  %2117 = vmatpush1.msra.mxu0 0.0
  %2118 = vmatprep.subr.mxu0 0.0
  %2119 = vmatpush1.msra.mxu0 0.0
  %2120 = vmatprep.subr.mxu0 0.0
  %2121 = vmatpush1.msra.mxu0 0.0
  %2122 = vmatprep.subr.mxu0 0.0
  %2123 = vmatpush1.msra.mxu0 0.0
  %2124 = vmatprep.subr.mxu0 0.0
  %2125 = vmatpush1.msra.mxu0 %v2091
  %2126 = vmatprep.subr.mxu0 0.0
  %2127 = vmatpush1.msra.mxu0 %v2090
  %2128 = vmatprep.subr.mxu0 0.0
  %2129 = vmatpush2.msra.mxu0 0.0
  %2130 = vmatprep.subr.mxu0 0.0
  %2131 = vmatpush2.msra.mxu0 0.0
  %2132 = vmatprep.subr.mxu0 0.0
  %2133 = vmatpush2.msra.mxu0 0.0
  %2134 = vmatprep.subr.mxu0 0.0
  %2135 = vmatpush2.msra.mxu0 0.0
  %2136 = vmatprep.subr.mxu0 0.0
  %2137 = vmatpush2.msra.mxu0 0.0
  %2138 = vmatprep.subr.mxu0 0.0
  %2139 = vmatpush2.msra.mxu0 0.0
  %2140 = vmatprep.subr.mxu0 0.0
  %2141 = vmatpush2.msra.mxu0 0.0
  %2142 = vmatprep.subr.mxu0 0.0
  %2143 = vmatpush2.msra.mxu0 0.0
  %2144 = vmatprep.subr.mxu0 0.0
  %2145 = vmatpush2.msra.mxu0 0.0
  %2146 = vmatprep.subr.mxu0 0.0
  %2147 = vmatpush2.msra.mxu0 0.0
  %2148 = vmatprep.subr.mxu0 0.0
  %2149 = vmatpush2.msra.mxu0 0.0
  %2150 = vmatprep.subr.mxu0 0.0
  %2151 = vmatpush2.msra.mxu0 0.0
  %2152 = vmatprep.subr.mxu0 0.0
  %2153 = vmatpush2.msra.mxu0 0.0
  %2154 = vmatprep.subr.mxu0 0.0
  %2155 = vmatpush2.msra.mxu0 0.0
  %2156 = vmatprep.subr.mxu0 0.0
  %2157 = vmatpush2.msra.mxu0 0.0
  %2158 = vmatprep.subr.mxu0 0.0
  %2159 = vmatpush2.msra.mxu0 0.0
  %2160 = vmatprep.mubr.f32.mxu0 0.0
  %2161 = vmatmul.mubr.f32.gmra.mxu0 %v2094
  %v2162 = vpop.f32.mrf.mxu0
  %v2163 = vadd.f32 %v2092, %v2162
  %v2164 = vpop.f32.mrf.mxu0
  %2165 = vdwg.mxu0
  %vm2166 = vcmask 7168
  %2167 = vst.msk [vmem:[%s5] sm:$0xff] %vm2166, %v2163
  // Predicated region
  $region22: #{price_prediction_forward.1} parent=0 // pred_check
    _
  $region23: #{price_prediction_forward.1} parent=0 // pred_check_branch
    %2169 = sbr.rel (0) target = $region25
  $region24: #{price_prediction_forward.1} parent=0 // pred_region
    _
  $region25: #{price_prediction_forward.1} parent=0 // pred_fallthru
    _
  // Predicated region
  $region26: #{price_prediction_forward.1} parent=0 // pred_check
    _
  $region27: #{price_prediction_forward.1} parent=0 // pred_check_branch
    %2171 = sbr.rel (0) target = $region29
  $region28: #{price_prediction_forward.1} parent=0 // pred_region
    _
  $region29: #{price_prediction_forward.1} parent=0 // pred_fallthru
    _

</llo_original>
